<compile_context>
chip_gen: v7x
topology: tpu7x:2x2x1
jax: 0.10.0
libtpu: 0.0.40
codegen_flags: <defaults>
</compile_context>

<pallas_src>
import functools

import jax
import jax.numpy as jnp
from jax import lax
from jax.experimental import pallas as pl
from jax.experimental.pallas import tpu as pltpu


_MARGIN = 128  # one vreg of lane margin on each side of the VMEM frames


def _round_up(x, m):
    return ((x + m - 1) // m) * m


def _resblock_kernel(x_hbm, w1_ref, b1_ref, w2_ref, b2_ref, cmask_ref,
                     o_ref, xbuf, hbuf, dma_sem, *,
                     C, H, R, Wr, Lsrc, width1, width2, compute_dtype):
    """One (image n, row-strip s) step of conv3x3 -> ReLU -> conv3x3.

    Flat frames (coord f = local_row * Wr + col, Wr a multiple of 128):
      xbuf[:, _MARGIN + f]   input strip, local rows 0 .. R+3  (2-row halo each side)
      hbuf[:, _MARGIN + g]   conv1 output, local rows 1 .. R+2 (g relative to row 1)
      o_ref[0][:, p]         conv2 output, local rows 2 .. R+1 (p relative to row 2)
    """
    n = pl.program_id(0)
    s = pl.program_id(1)
    row0 = s * R                       # first extended row of this strip

    # ---- stream the halo'd input strip (R+4 rows) into the margined frame ----
    start = pl.multiple_of(row0 * Wr, 128)
    cp = pltpu.make_async_copy(
        x_hbm.at[n, :, pl.ds(start, Lsrc)],
        xbuf.at[:, pl.ds(_MARGIN, Lsrc)],
        dma_sem)
    cp.start()
    # Zero the 1-vreg margins while the DMA is in flight.  Margin lanes only
    # feed masked / discarded output positions, but they must hold finite
    # values so the 0-mask multiply cannot manufacture NaNs.
    zeros = jnp.zeros((C, _MARGIN), dtype=xbuf.dtype)
    xbuf[:, 0:_MARGIN] = zeros
    xbuf[:, _MARGIN + Lsrc:_MARGIN + Lsrc + _MARGIN] = zeros
    hzeros = jnp.zeros((C, _MARGIN), dtype=hbuf.dtype)
    hbuf[:, 0:_MARGIN] = hzeros
    hbuf[:, _MARGIN + width1:_MARGIN + width1 + _MARGIN] = hzeros
    cp.wait()

    def conv3x3(src_ref, out_width, w_ref, b_ref):
        # src_ref[:, _MARGIN + f] = source at flat coord f.  Output at coord q
        # reads the source at q + dy*Wr + (dx - 1), dy, dx in {0, 1, 2}.
        src = src_ref[...]
        if src.dtype != compute_dtype:
            src = src.astype(compute_dtype)
        span = out_width + 2 * Wr
        # Hoist the only non-128-aligned lane shifts (dx-1 in {-1, 0, +1}) once.
        shifted = [src[:, _MARGIN + d:_MARGIN + d + span] for d in (-1, 0, 1)]
        # Every tap is then a 128-aligned (cheap) slice; stack on sublanes so
        # the whole conv is a single K = 9*C matmul.
        pieces = [shifted[dx][:, dy * Wr:dy * Wr + out_width]
                  for dy in range(3) for dx in range(3)]
        stacked = jnp.concatenate(pieces, axis=0)              # (9*C, out_width)
        acc = jnp.dot(w_ref[...], stacked,
                      preferred_element_type=jnp.float32)      # (C, out_width)
        return acc + b_ref[...]                                # bias (C, 1)

    # conv1 -> ReLU, then re-zero the padding ring of the intermediate
    # activation (this IS conv2's zero padding).  The column part of the mask
    # is precomputed (strip independent); the row part is two compares against
    # the strip's first / last real image row (no div/mod needed since row
    # boundaries are multiples of Wr).
    h = jnp.maximum(conv3x3(xbuf, width1, w1_ref, b1_ref), 0.0)
    j = lax.broadcasted_iota(jnp.int32, (1, width1), 1)
    row_ok = (j >= (1 - row0) * Wr) & (j < (H - row0 + 1) * Wr)
    h = h * cmask_ref[...] * row_ok.astype(h.dtype)
    hbuf[:, _MARGIN:_MARGIN + width1] = h.astype(hbuf.dtype)

    # conv2 over the re-padded intermediate; output rows == this strip's rows.
    out = conv3x3(hbuf, width2, w2_ref, b2_ref)
    o_ref[0] = out.astype(o_ref.dtype)


def residual_block(x, w1, b1, w2, b2, *, compute_dtype=jnp.float32):
    """conv2(relu(conv1(x))), both convs 3x3 / stride 1 / pad 1, with bias.

    x      : (N, C, H, W) float32 (NCHW, like the PyTorch module)
    w1, w2 : (C, C, 3, 3) PyTorch OIHW conv weights
    b1, b2 : (C,)         conv biases
    compute_dtype=jnp.bfloat16 feeds the MXU bf16 operands (f32 accumulation);
    recommended for large C.  float32 default preserves the module's numerics.
    """
    N, C, H, W = x.shape
    Wp = W + 2                              # spatially padded row width
    Wr = _round_up(Wp, 128)                 # lane-aligned row width
    Hext = H + 4                            # pad ring + halo row, each side

    # Row-strip size: largest divisor of H whose strip is <= ~1024 output
    # lanes.  Bounds per-step VMEM (frames + the two (9C, width) stacked matmul
    # operands) well under v7x's 64 MiB while keeping lane-dense tiles, and
    # gives >= 2 parallel grid steps.
    lane_target = max(Wr, 1024)
    R = 1
    for r in range(1, H + 1):
        if H % r == 0 and r * Wr <= lane_target:
            R = r
    n_strips = H // R
    Rext = R + 4
    Lsrc = Rext * Wr
    width1 = (R + 2) * Wr
    width2 = R * Wr

    # One pad folds the conv zero-padding, the lane alignment and the strip
    # halo rows; the reshape to the flat row-aligned layout is free.
    x_ext = jnp.pad(x, ((0, 0), (0, 0), (2, 2), (1, Wr - 1 - W)))
    x_ext = x_ext.reshape(N, C, Hext * Wr).astype(compute_dtype)

    # Fused 3x3 weights: (Cout, 9*Cin), contraction ordered tap-major
    # (k = (dy*3+dx)*Cin + cin) to match the in-kernel sublane stacking.
    w1f = jnp.transpose(w1, (0, 2, 3, 1)).reshape(C, 9 * C).astype(compute_dtype)
    w2f = jnp.transpose(w2, (0, 2, 3, 1)).reshape(C, 9 * C).astype(compute_dtype)
    b1c = b1.reshape(C, 1).astype(jnp.float32)
    b2c = b2.reshape(C, 1).astype(jnp.float32)

    # Strip-independent column mask of the intermediate activation's interior.
    col = jnp.arange(width1, dtype=jnp.int32) % Wr
    cmask = ((col >= 1) & (col <= W)).astype(jnp.float32).reshape(1, width1)

    esz = jnp.dtype(compute_dtype).itemsize
    vmem_est = (C * (Lsrc + 2 * _MARGIN) * esz            # xbuf
                + C * (width1 + 2 * _MARGIN) * esz        # hbuf
                + 9 * C * (width1 + width2) * esz         # stacked matmul operands
                + 3 * C * Lsrc * esz                      # hoisted dx shifts
                + 2 * 2 * C * 9 * C * esz                 # resident fused weights
                + 2 * C * width2 * x.dtype.itemsize       # double-buffered output
                + width1 * 4)                             # column mask
    vmem_limit = int(min(64 * 1024 * 1024, max(32 * 1024 * 1024, 2 * vmem_est)))

    flops = 2 * 2 * 9 * C * C * H * W * N                 # 2 convs, 2 flops/MAC
    bytes_accessed = int(x_ext.size * esz
                         + N * C * H * Wr * x.dtype.itemsize
                         + (w1f.size + w2f.size) * esz
                         + (b1c.size + b2c.size + cmask.size) * 4)

    kernel = functools.partial(
        _resblock_kernel, C=C, H=H, R=R, Wr=Wr, Lsrc=Lsrc,
        width1=width1, width2=width2, compute_dtype=compute_dtype)

    out_flat = pl.pallas_call(
        kernel,
        out_shape=jax.ShapeDtypeStruct((N, C, H * Wr), x.dtype),
        grid_spec=pltpu.PrefetchScalarGridSpec(
            num_scalar_prefetch=0,
            grid=(N, n_strips),
            in_specs=[
                pl.BlockSpec(memory_space=pl.ANY),               # input (HBM)
                pl.BlockSpec((C, 9 * C), lambda n, s: (0, 0)),   # w1 fused (resident)
                pl.BlockSpec((C, 1), lambda n, s: (0, 0)),       # b1
                pl.BlockSpec((C, 9 * C), lambda n, s: (0, 0)),   # w2 fused (resident)
                pl.BlockSpec((C, 1), lambda n, s: (0, 0)),       # b2
                pl.BlockSpec((1, width1), lambda n, s: (0, 0)),  # column mask
            ],
            out_specs=pl.BlockSpec((1, C, width2), lambda n, s: (n, 0, s)),
            scratch_shapes=[
                pltpu.VMEM((C, Lsrc + 2 * _MARGIN), compute_dtype),    # input frame
                pltpu.VMEM((C, width1 + 2 * _MARGIN), compute_dtype),  # h frame
                pltpu.SemaphoreType.DMA,                               # strip DMA
            ]),
        compiler_params=pltpu.CompilerParams(
            dimension_semantics=("parallel", "parallel"),
            vmem_limit_bytes=vmem_limit),
        cost_estimate=pl.CostEstimate(
            flops=flops, transcendentals=0, bytes_accessed=bytes_accessed),
    )(x_ext, w1f, b1c, w2f, b2c, cmask)

    # Lane-padded rows -> NCHW: free reshape + one column slice.
    return out_flat.reshape(N, C, H, Wr)[:, :, :, 1:1 + W]


def _reference(x, w1, b1, w2, b2):
    """Pure-JAX reference matching PyTorch NCHW conv semantics."""
    dn = lax.conv_dimension_numbers(x.shape, w1.shape, ("NCHW", "OIHW", "NCHW"))
    h = lax.conv_general_dilated(x, w1, (1, 1), ((1, 1), (1, 1)),
                                 dimension_numbers=dn)
    h = jnp.maximum(h + b1[None, :, None, None], 0.0)
    o = lax.conv_general_dilated(h, w2, (1, 1), ((1, 1), (1, 1)),
                                 dimension_numbers=dn)
    return o + b2[None, :, None, None]


if __name__ == "__main__":
    N, C, H, W = 2, 4, 16, 16
    key = jax.random.PRNGKey(0)
    kx, k1, k2, kb1, kb2 = jax.random.split(key, 5)

    x = jax.random.normal(kx, (N, C, H, W), dtype=jnp.float32)
    # Deterministic synthetic parameters (PyTorch shapes: OIHW + bias).
    fan_in = C * 3 * 3
    w1 = jax.random.normal(k1, (C, C, 3, 3), dtype=jnp.float32) / fan_in ** 0.5
    w2 = jax.random.normal(k2, (C, C, 3, 3), dtype=jnp.float32) / fan_in ** 0.5
    b1 = jax.random.normal(kb1, (C,), dtype=jnp.float32) * 0.1
    b2 = jax.random.normal(kb2, (C,), dtype=jnp.float32) * 0.1

    out = jax.block_until_ready(jax.jit(residual_block)(x, w1, b1, w2, b2))
    ref = jax.block_until_ready(_reference(x, w1, b1, w2, b2))

    assert out.shape == (N, C, H, W), out.shape
    assert jnp.allclose(out, ref, atol=1e-4, rtol=1e-4), float(
        jnp.max(jnp.abs(out - ref)))
    print("KERNEL_OK")
</pallas_src>

<mosaic_0001>
module attributes {stable_mosaic.version = 11 : i64} {
  func.func @_resblock_kernel(%arg0: i32, %arg1: i32, %arg2: memref<2x4x2560xf32, #tpu.memory_space<any>>, %arg3: memref<4x36xf32, #tpu.memory_space<vmem>>, %arg4: memref<4x1xf32, #tpu.memory_space<vmem>>, %arg5: memref<4x36xf32, #tpu.memory_space<vmem>>, %arg6: memref<4x1xf32, #tpu.memory_space<vmem>>, %arg7: memref<1x1280xf32, #tpu.memory_space<vmem>>, %arg8: memref<1x4x1024xf32, #tpu.memory_space<vmem>>, %arg9: memref<4x1792xf32, #tpu.memory_space<vmem>>, %arg10: memref<4x1536xf32, #tpu.memory_space<vmem>>, %arg11: memref<!tpu.dma_semaphore, #tpu.memory_space<semaphore_mem>>) attributes {dimension_semantics = [#tpu.dimension_semantics<parallel>, #tpu.dimension_semantics<parallel>], iteration_bounds = array<i64: 2, 2>, scalar_prefetch = 0 : i64, scratch_operands = 3 : i64, tpu.core_type = #tpu.core_type<tc>, window_params = [{}, {pipeline_mode = #tpu.pipeline_mode<synchronous>, transform_indices = @transform_1, window_bounds = array<i64: 4, 36>}, {pipeline_mode = #tpu.pipeline_mode<synchronous>, transform_indices = @transform_2, window_bounds = array<i64: 4, 1>}, {pipeline_mode = #tpu.pipeline_mode<synchronous>, transform_indices = @transform_3, window_bounds = array<i64: 4, 36>}, {pipeline_mode = #tpu.pipeline_mode<synchronous>, transform_indices = @transform_4, window_bounds = array<i64: 4, 1>}, {pipeline_mode = #tpu.pipeline_mode<synchronous>, transform_indices = @transform_5, window_bounds = array<i64: 1, 1280>}, {transform_indices = @transform_6, window_bounds = array<i64: 1, 4, 1024>}]} {
    %c8_i32 = arith.constant 8 : i32
    %0 = arith.muli %arg1, %c8_i32 : i32
    %c128_i32 = arith.constant 128 : i32
    %1 = arith.muli %0, %c128_i32 : i32
    %2 = tpu.assume_multiple %1, 128 : i32
    %c0_i32 = arith.constant 0 : i32
    %3 = tpu.memref_slice %arg2[%arg0, %c0_i32, %2] : memref<2x4x2560xf32, #tpu.memory_space<any>> -> memref<1x4x1536xf32, #tpu.memory_space<any>>
    %4 = tpu.memref_squeeze %3 : memref<1x4x1536xf32, #tpu.memory_space<any>> -> memref<4x1536xf32, #tpu.memory_space<any>>
    %c0_i32_0 = arith.constant 0 : i32
    %c128_i32_1 = arith.constant 128 : i32
    %5 = tpu.memref_slice %arg9[%c0_i32_0, %c128_i32_1] : memref<4x1792xf32, #tpu.memory_space<vmem>> -> memref<4x1536xf32, #tpu.memory_space<vmem>>
    tpu.enqueue_dma source(%4 : memref<4x1536xf32, #tpu.memory_space<any>>) target(%5 : memref<4x1536xf32, #tpu.memory_space<vmem>>) target_semaphore(%arg11 : memref<!tpu.dma_semaphore, #tpu.memory_space<semaphore_mem>>)
    %cst = arith.constant 0.000000e+00 : f32
    %6 = vector.broadcast %cst : f32 to vector<4x128xf32>
    %c0 = arith.constant 0 : index
    %c0_2 = arith.constant 0 : index
    %7 = vector.load %arg9[%c0, %c0_2] : memref<4x1792xf32, #tpu.memory_space<vmem>>, vector<4x128xf32>
    tpu.vector_store %arg9[%c0, %c0_2], %6 {strides = array<i32>} : memref<4x1792xf32, #tpu.memory_space<vmem>>, vector<4x128xf32>,
    %c0_3 = arith.constant 0 : index
    %c1664 = arith.constant 1664 : index
    %8 = vector.load %arg9[%c0_3, %c1664] : memref<4x1792xf32, #tpu.memory_space<vmem>>, vector<4x128xf32>
    tpu.vector_store %arg9[%c0_3, %c1664], %6 {strides = array<i32>} : memref<4x1792xf32, #tpu.memory_space<vmem>>, vector<4x128xf32>,
    %cst_4 = arith.constant 0.000000e+00 : f32
    %9 = vector.broadcast %cst_4 : f32 to vector<4x128xf32>
    %c0_5 = arith.constant 0 : index
    %c0_6 = arith.constant 0 : index
    %10 = vector.load %arg10[%c0_5, %c0_6] : memref<4x1536xf32, #tpu.memory_space<vmem>>, vector<4x128xf32>
    tpu.vector_store %arg10[%c0_5, %c0_6], %9 {strides = array<i32>} : memref<4x1536xf32, #tpu.memory_space<vmem>>, vector<4x128xf32>,
    %c0_7 = arith.constant 0 : index
    %c1408 = arith.constant 1408 : index
    %11 = vector.load %arg10[%c0_7, %c1408] : memref<4x1536xf32, #tpu.memory_space<vmem>>, vector<4x128xf32>
    tpu.vector_store %arg10[%c0_7, %c1408], %9 {strides = array<i32>} : memref<4x1536xf32, #tpu.memory_space<vmem>>, vector<4x128xf32>,
    %c0_i32_8 = arith.constant 0 : i32
    %12 = tpu.memref_slice %arg2[%arg0, %c0_i32_8, %2] : memref<2x4x2560xf32, #tpu.memory_space<any>> -> memref<1x4x1536xf32, #tpu.memory_space<any>>
    %13 = tpu.memref_squeeze %12 : memref<1x4x1536xf32, #tpu.memory_space<any>> -> memref<4x1536xf32, #tpu.memory_space<any>>
    %c0_i32_9 = arith.constant 0 : i32
    %c128_i32_10 = arith.constant 128 : i32
    %14 = tpu.memref_slice %arg9[%c0_i32_9, %c128_i32_10] : memref<4x1792xf32, #tpu.memory_space<vmem>> -> memref<4x1536xf32, #tpu.memory_space<vmem>>
    tpu.wait_dma2 semaphore(%arg11 : memref<!tpu.dma_semaphore, #tpu.memory_space<semaphore_mem>>) src(%13 : memref<4x1536xf32, #tpu.memory_space<any>>) dst(%14 : memref<4x1536xf32, #tpu.memory_space<vmem>>)
    %c0_11 = arith.constant 0 : index
    %c0_12 = arith.constant 0 : index
    %15 = vector.load %arg9[%c0_11, %c0_12] : memref<4x1792xf32, #tpu.memory_space<vmem>>, vector<4x1792xf32>
    %16 = vector.extract_strided_slice %15 {offsets = [0, 127], sizes = [4, 1536], strides = [1, 1]} : vector<4x1792xf32> to vector<4x1536xf32>
    %17 = vector.extract_strided_slice %15 {offsets = [0, 128], sizes = [4, 1536], strides = [1, 1]} : vector<4x1792xf32> to vector<4x1536xf32>
    %18 = vector.extract_strided_slice %15 {offsets = [0, 129], sizes = [4, 1536], strides = [1, 1]} : vector<4x1792xf32> to vector<4x1536xf32>
    %19 = vector.extract_strided_slice %16 {offsets = [0, 0], sizes = [4, 1280], strides = [1, 1]} : vector<4x1536xf32> to vector<4x1280xf32>
    %20 = vector.extract_strided_slice %17 {offsets = [0, 0], sizes = [4, 1280], strides = [1, 1]} : vector<4x1536xf32> to vector<4x1280xf32>
    %21 = vector.extract_strided_slice %18 {offsets = [0, 0], sizes = [4, 1280], strides = [1, 1]} : vector<4x1536xf32> to vector<4x1280xf32>
    %22 = vector.extract_strided_slice %16 {offsets = [0, 128], sizes = [4, 1280], strides = [1, 1]} : vector<4x1536xf32> to vector<4x1280xf32>
    %23 = vector.extract_strided_slice %17 {offsets = [0, 128], sizes = [4, 1280], strides = [1, 1]} : vector<4x1536xf32> to vector<4x1280xf32>
    %24 = vector.extract_strided_slice %18 {offsets = [0, 128], sizes = [4, 1280], strides = [1, 1]} : vector<4x1536xf32> to vector<4x1280xf32>
    %25 = vector.extract_strided_slice %16 {offsets = [0, 256], sizes = [4, 1280], strides = [1, 1]} : vector<4x1536xf32> to vector<4x1280xf32>
    %26 = vector.extract_strided_slice %17 {offsets = [0, 256], sizes = [4, 1280], strides = [1, 1]} : vector<4x1536xf32> to vector<4x1280xf32>
    %27 = vector.extract_strided_slice %18 {offsets = [0, 256], sizes = [4, 1280], strides = [1, 1]} : vector<4x1536xf32> to vector<4x1280xf32>
    %28 = tpu.concatenate %19, %20, %21, %22, %23, %24, %25, %26, %27 in 0 : vector<4x1280xf32>, vector<4x1280xf32>, vector<4x1280xf32>, vector<4x1280xf32>, vector<4x1280xf32>, vector<4x1280xf32>, vector<4x1280xf32>, vector<4x1280xf32>, vector<4x1280xf32> -> vector<36x1280xf32>
    %c0_13 = arith.constant 0 : index
    %c0_14 = arith.constant 0 : index
    %29 = vector.load %arg3[%c0_13, %c0_14] : memref<4x36xf32, #tpu.memory_space<vmem>>, vector<4x36xf32>
    %cst_15 = arith.constant dense<0.000000e+00> : vector<4x1280xf32>
    %30 = tpu.matmul %29, %28, %cst_15 {dimension_numbers = #tpu.dot_dimension_numbers<[1], [0], [0], [1], [0, 0, 1, 1], [], []>} : vector<4x36xf32>, vector<36x1280xf32>, vector<4x1280xf32> -> vector<4x1280xf32>
    %c0_16 = arith.constant 0 : index
    %c0_17 = arith.constant 0 : index
    %31 = vector.load %arg4[%c0_16, %c0_17] : memref<4x1xf32, #tpu.memory_space<vmem>>, vector<4x1xf32>
    %32 = vector.broadcast %31 : vector<4x1xf32> to vector<4x1280xf32>
    %33 = arith.addf %30, %32 : vector<4x1280xf32>
    %cst_18 = arith.constant 0.000000e+00 : f32
    %34 = vector.broadcast %cst_18 : f32 to vector<4x1280xf32>
    %35 = arith.maximumf %33, %34 : vector<4x1280xf32>
    %36 = tpu.iota {dimensions = array<i32: 1>} : vector<1x1280xi32>
    %c1_i32 = arith.constant 1 : i32
    %37 = arith.subi %c1_i32, %0 : i32
    %c128_i32_19 = arith.constant 128 : i32
    %38 = arith.muli %37, %c128_i32_19 : i32
    %39 = vector.broadcast %38 : i32 to vector<1x1280xi32>
    %40 = arith.cmpi sge, %36, %39 : vector<1x1280xi32>
    %c16_i32 = arith.constant 16 : i32
    %41 = arith.subi %c16_i32, %0 : i32
    %c1_i32_20 = arith.constant 1 : i32
    %42 = arith.addi %41, %c1_i32_20 : i32
    %c128_i32_21 = arith.constant 128 : i32
    %43 = arith.muli %42, %c128_i32_21 : i32
    %44 = vector.broadcast %43 : i32 to vector<1x1280xi32>
    %45 = arith.cmpi slt, %36, %44 : vector<1x1280xi32>
    %46 = arith.andi %40, %45 : vector<1x1280xi1>
    %c0_22 = arith.constant 0 : index
    %c0_23 = arith.constant 0 : index
    %47 = vector.load %arg7[%c0_22, %c0_23] : memref<1x1280xf32, #tpu.memory_space<vmem>>, vector<1x1280xf32>
    %48 = vector.broadcast %47 : vector<1x1280xf32> to vector<4x1280xf32>
    %49 = arith.mulf %35, %48 : vector<4x1280xf32>
    %50 = arith.extui %46 : vector<1x1280xi1> to vector<1x1280xi32>
    %51 = arith.sitofp %50 : vector<1x1280xi32> to vector<1x1280xf32>
    %52 = vector.broadcast %51 : vector<1x1280xf32> to vector<4x1280xf32>
    %53 = arith.mulf %49, %52 : vector<4x1280xf32>
    %c0_24 = arith.constant 0 : index
    %c128 = arith.constant 128 : index
    %54 = vector.load %arg10[%c0_24, %c128] : memref<4x1536xf32, #tpu.memory_space<vmem>>, vector<4x1280xf32>
    tpu.vector_store %arg10[%c0_24, %c128], %53 {strides = array<i32>} : memref<4x1536xf32, #tpu.memory_space<vmem>>, vector<4x1280xf32>,
    %c0_25 = arith.constant 0 : index
    %c0_26 = arith.constant 0 : index
    %55 = vector.load %arg10[%c0_25, %c0_26] : memref<4x1536xf32, #tpu.memory_space<vmem>>, vector<4x1536xf32>
    %56 = vector.extract_strided_slice %55 {offsets = [0, 127], sizes = [4, 1280], strides = [1, 1]} : vector<4x1536xf32> to vector<4x1280xf32>
    %57 = vector.extract_strided_slice %55 {offsets = [0, 128], sizes = [4, 1280], strides = [1, 1]} : vector<4x1536xf32> to vector<4x1280xf32>
    %58 = vector.extract_strided_slice %55 {offsets = [0, 129], sizes = [4, 1280], strides = [1, 1]} : vector<4x1536xf32> to vector<4x1280xf32>
    %59 = vector.extract_strided_slice %56 {offsets = [0, 0], sizes = [4, 1024], strides = [1, 1]} : vector<4x1280xf32> to vector<4x1024xf32>
    %60 = vector.extract_strided_slice %57 {offsets = [0, 0], sizes = [4, 1024], strides = [1, 1]} : vector<4x1280xf32> to vector<4x1024xf32>
    %61 = vector.extract_strided_slice %58 {offsets = [0, 0], sizes = [4, 1024], strides = [1, 1]} : vector<4x1280xf32> to vector<4x1024xf32>
    %62 = vector.extract_strided_slice %56 {offsets = [0, 128], sizes = [4, 1024], strides = [1, 1]} : vector<4x1280xf32> to vector<4x1024xf32>
    %63 = vector.extract_strided_slice %57 {offsets = [0, 128], sizes = [4, 1024], strides = [1, 1]} : vector<4x1280xf32> to vector<4x1024xf32>
    %64 = vector.extract_strided_slice %58 {offsets = [0, 128], sizes = [4, 1024], strides = [1, 1]} : vector<4x1280xf32> to vector<4x1024xf32>
    %65 = vector.extract_strided_slice %56 {offsets = [0, 256], sizes = [4, 1024], strides = [1, 1]} : vector<4x1280xf32> to vector<4x1024xf32>
    %66 = vector.extract_strided_slice %57 {offsets = [0, 256], sizes = [4, 1024], strides = [1, 1]} : vector<4x1280xf32> to vector<4x1024xf32>
    %67 = vector.extract_strided_slice %58 {offsets = [0, 256], sizes = [4, 1024], strides = [1, 1]} : vector<4x1280xf32> to vector<4x1024xf32>
    %68 = tpu.concatenate %59, %60, %61, %62, %63, %64, %65, %66, %67 in 0 : vector<4x1024xf32>, vector<4x1024xf32>, vector<4x1024xf32>, vector<4x1024xf32>, vector<4x1024xf32>, vector<4x1024xf32>, vector<4x1024xf32>, vector<4x1024xf32>, vector<4x1024xf32> -> vector<36x1024xf32>
    %c0_27 = arith.constant 0 : index
    %c0_28 = arith.constant 0 : index
    %69 = vector.load %arg5[%c0_27, %c0_28] : memref<4x36xf32, #tpu.memory_space<vmem>>, vector<4x36xf32>
    %cst_29 = arith.constant dense<0.000000e+00> : vector<4x1024xf32>
    %70 = tpu.matmul %69, %68, %cst_29 {dimension_numbers = #tpu.dot_dimension_numbers<[1], [0], [0], [1], [0, 0, 1, 1], [], []>} : vector<4x36xf32>, vector<36x1024xf32>, vector<4x1024xf32> -> vector<4x1024xf32>
    %c0_30 = arith.constant 0 : index
    %c0_31 = arith.constant 0 : index
    %71 = vector.load %arg6[%c0_30, %c0_31] : memref<4x1xf32, #tpu.memory_space<vmem>>, vector<4x1xf32>
    %72 = vector.broadcast %71 : vector<4x1xf32> to vector<4x1024xf32>
    %73 = arith.addf %70, %72 : vector<4x1024xf32>
    %c0_32 = arith.constant 0 : index
    %c0_33 = arith.constant 0 : index
    %c0_34 = arith.constant 0 : index
    %74 = vector.load %arg8[%c0_32, %c0_33, %c0_34] : memref<1x4x1024xf32, #tpu.memory_space<vmem>>, vector<1x4x1024xf32>
    %75 = vector.shape_cast %74 : vector<1x4x1024xf32> to vector<4x1024xf32>
    %76 = vector.shape_cast %73 : vector<4x1024xf32> to vector<1x4x1024xf32>
    tpu.vector_store %arg8[%c0_32, %c0_33, %c0_34], %76 {strides = array<i32>} : memref<1x4x1024xf32, #tpu.memory_space<vmem>>, vector<1x4x1024xf32>,
    return
  }
  func.func @transform_1(%arg0: i32, %arg1: i32) -> (i32, i32) {
    %c0_i32 = arith.constant 0 : i32
    %c0_i32_0 = arith.constant 0 : i32
    %c0_i32_1 = arith.constant 0 : i32
    return %c0_i32, %c0_i32_0 : i32, i32
  }
  func.func @transform_2(%arg0: i32, %arg1: i32) -> (i32, i32) {
    %c0_i32 = arith.constant 0 : i32
    %c0_i32_0 = arith.constant 0 : i32
    %c0_i32_1 = arith.constant 0 : i32
    return %c0_i32, %c0_i32_0 : i32, i32
  }
  func.func @transform_3(%arg0: i32, %arg1: i32) -> (i32, i32) {
    %c0_i32 = arith.constant 0 : i32
    %c0_i32_0 = arith.constant 0 : i32
    %c0_i32_1 = arith.constant 0 : i32
    return %c0_i32, %c0_i32_0 : i32, i32
  }
  func.func @transform_4(%arg0: i32, %arg1: i32) -> (i32, i32) {
    %c0_i32 = arith.constant 0 : i32
    %c0_i32_0 = arith.constant 0 : i32
    %c0_i32_1 = arith.constant 0 : i32
    return %c0_i32, %c0_i32_0 : i32, i32
  }
  func.func @transform_5(%arg0: i32, %arg1: i32) -> (i32, i32) {
    %c0_i32 = arith.constant 0 : i32
    %c0_i32_0 = arith.constant 0 : i32
    %c0_i32_1 = arith.constant 0 : i32
    return %c0_i32, %c0_i32_0 : i32, i32
  }
  func.func @transform_6(%arg0: i32, %arg1: i32) -> (i32, i32, i32) {
    %c0_i32 = arith.constant 0 : i32
    %c0_i32_0 = arith.constant 0 : i32
    return %arg0, %c0_i32, %arg1 : i32, i32, i32
  }
}

</mosaic_0001>

<llo_original>
// kernel: residual_block.1
$region0: #{residual_block.1}
  #allocation0 [shape = 'u32[]', space=smem, size = 0x4, offset = 0x4, fixed_abs, tag = 'smem constant byte address 0x4 - core index']
  #allocation1 [shape = 'u32[144,128]{1,0:T(1,128)}', space=vmem, size = 0x12000, scoped, tag = 'internal scratch']
  #allocation2 [shape = 'f32[4,1792]{1,0:T(4,128)}', space=vmem, size = 0x7000, scoped, tag = 'scratch operand']
  #allocation3 [shape = 'f32[4,1536]{1,0:T(4,128)}', space=vmem, size = 0x6000, scoped, tag = 'scratch operand']
  #allocation4 [shape = 's32[1]{0}', space=sflag, size = 0x4, scoped, tag = 'scratch operand']
  #allocation5 [shape = 's32[]', space=sflag, size = 0x4, offset = 0, fixed_abs, tag = 'sflag constant byte address 0x0 - dummy sync flag']
  %s0 = inlined_call_operand.vmem [shape: f32[2,4,2560], index: 0, kind: input, shape index: {}]
  %s1 = inlined_call_operand.vmem [shape: f32[4,36], index: 1, kind: input, shape index: {}]
  %s2 = inlined_call_operand.vmem [shape: f32[4,1], index: 2, kind: input, shape index: {}]
  %s3 = inlined_call_operand.vmem [shape: f32[4,36], index: 3, kind: input, shape index: {}]
  %s4 = inlined_call_operand.vmem [shape: f32[4,1], index: 4, kind: input, shape index: {}]
  %s5 = inlined_call_operand.vmem [shape: f32[1,1280], index: 5, kind: input, shape index: {}]
  %s6 = inlined_call_operand.vmem [shape: f32[2,4,2048], index: 6, kind: output, shape index: {}]
  %s7 = sld [smem:[#allocation0]]
  $region87: #{residual_block.1} parent=0
    _
  %s9 = ssub.s32 1, %s7
  %s10 = scalar_select 0, %s9, %s7
  loop: start=0, step=1, limit=6
  $region2: #{residual_block.1} parent=0 // loop_pre_header
    _
  $region3: #{residual_block.1} parent=0 // loop_header
    %s12 = sphi 0, %s16
    %p13 = scmp.ge.s32.totalorder %s12, 6
    %s19 = sphi 0, %s31
    %s20 = sphi 0, %s27
    %s21 = sphi 0, %s19
    %s22 = sphi 0, %s20
    %s23 = sphi 0, %s21
    %s24 = sphi 0, %s22
    %s32 = sphi 0, %s32
    %s34 = sphi 0, %s32
    %s35 = sphi 0, %s34
    %s49 = sphi 0, %s35
    %s53 = sphi 0, %s53
    %s55 = sphi 0, %s53
    %s56 = sphi 0, %s55
    %s70 = sphi 0, %s56
    %s74 = sphi 0, %s74
    %s76 = sphi 0, %s74
    %s77 = sphi 0, %s76
    %s91 = sphi 0, %s77
    %s95 = sphi 0, %s95
    %s97 = sphi 0, %s95
    %s98 = sphi 0, %s97
    %s112 = sphi 0, %s98
    %s116 = sphi 0, %s116
    %s118 = sphi 0, %s116
    %s119 = sphi 0, %s118
    %s133 = sphi 0, %s119
    %s141 = sphi 0, %s143
    %s144 = sphi 0, %s141
    %s145 = sphi 0, %s144
    %s161 = sphi 0, %s145
  $region4: #{residual_block.1} parent=0 // loop_header_branch
    %15 = sbr.rel (%p13) target = $region8
  $region5: #{residual_block.1} parent=0 // loop_body
    %s17 = ssub.s32 %s12, 1
    %s18 = ssub.s32 %s12, 2
    %s25 = sadd.s32 1, %s20
    %p26 = scmp.ge.s32.totalorder %s25, 2
    %s27 = scalar_select %p26, 0, %s25
    %s28 = sadd.s32 1, %s19
    %s29 = scalar_select %p26, %s28, %s19
    %p30 = scmp.ge.s32.totalorder %s29, 2
    %s31 = scalar_select %p30, 0, %s29
    %s33 = sadd.s32 %s32, 1
    %p36 = scmp.eq.s32.totalorder %s12, 3
    %p37 = scmp.ne.s32.totalorder %s32, %s34
    %p38 = scmp.eq.s32.totalorder %s12, 0
    %p39 = por %p37, %p38
    %p40 = scmp.ne.s32.totalorder %s32, %s34
    %p41 = scmp.eq.s32.totalorder %s17, 3
    %p42 = por %p40, %p41
    %p43 = scmp.ne.s32.totalorder %s34, %s35
    %p44 = scmp.eq.s32.totalorder %s17, 0
    %p45 = por %p43, %p44
    %p46 = scmp.ne.s32.totalorder %s34, %s35
    %p47 = scmp.eq.s32.totalorder %s18, 3
    %p48 = por %p46, %p47
    %p50 = scmp.ne.s32.totalorder %s35, %s49
    %p51 = scmp.eq.s32.totalorder %s18, 0
    %p52 = por %p50, %p51
    %s54 = sadd.s32 %s53, 1
    %p57 = scmp.eq.s32.totalorder %s12, 3
    %p58 = scmp.ne.s32.totalorder %s53, %s55
    %p59 = scmp.eq.s32.totalorder %s12, 0
    %p60 = por %p58, %p59
    %p61 = scmp.ne.s32.totalorder %s53, %s55
    %p62 = scmp.eq.s32.totalorder %s17, 3
    %p63 = por %p61, %p62
    %p64 = scmp.ne.s32.totalorder %s55, %s56
    %p65 = scmp.eq.s32.totalorder %s17, 0
    %p66 = por %p64, %p65
    %p67 = scmp.ne.s32.totalorder %s55, %s56
    %p68 = scmp.eq.s32.totalorder %s18, 3
    %p69 = por %p67, %p68
    %p71 = scmp.ne.s32.totalorder %s56, %s70
    %p72 = scmp.eq.s32.totalorder %s18, 0
    %p73 = por %p71, %p72
    %s75 = sadd.s32 %s74, 1
    %p78 = scmp.eq.s32.totalorder %s12, 3
    %p79 = scmp.ne.s32.totalorder %s74, %s76
    %p80 = scmp.eq.s32.totalorder %s12, 0
    %p81 = por %p79, %p80
    %p82 = scmp.ne.s32.totalorder %s74, %s76
    %p83 = scmp.eq.s32.totalorder %s17, 3
    %p84 = por %p82, %p83
    %p85 = scmp.ne.s32.totalorder %s76, %s77
    %p86 = scmp.eq.s32.totalorder %s17, 0
    %p87 = por %p85, %p86
    %p88 = scmp.ne.s32.totalorder %s76, %s77
    %p89 = scmp.eq.s32.totalorder %s18, 3
    %p90 = por %p88, %p89
    %p92 = scmp.ne.s32.totalorder %s77, %s91
    %p93 = scmp.eq.s32.totalorder %s18, 0
    %p94 = por %p92, %p93
    %s96 = sadd.s32 %s95, 1
    %p99 = scmp.eq.s32.totalorder %s12, 3
    %p100 = scmp.ne.s32.totalorder %s95, %s97
    %p101 = scmp.eq.s32.totalorder %s12, 0
    %p102 = por %p100, %p101
    %p103 = scmp.ne.s32.totalorder %s95, %s97
    %p104 = scmp.eq.s32.totalorder %s17, 3
    %p105 = por %p103, %p104
    %p106 = scmp.ne.s32.totalorder %s97, %s98
    %p107 = scmp.eq.s32.totalorder %s17, 0
    %p108 = por %p106, %p107
    %p109 = scmp.ne.s32.totalorder %s97, %s98
    %p110 = scmp.eq.s32.totalorder %s18, 3
    %p111 = por %p109, %p110
    %p113 = scmp.ne.s32.totalorder %s98, %s112
    %p114 = scmp.eq.s32.totalorder %s18, 0
    %p115 = por %p113, %p114
    %s117 = sadd.s32 %s116, 1
    %p120 = scmp.eq.s32.totalorder %s12, 3
    %p121 = scmp.ne.s32.totalorder %s116, %s118
    %p122 = scmp.eq.s32.totalorder %s12, 0
    %p123 = por %p121, %p122
    %p124 = scmp.ne.s32.totalorder %s116, %s118
    %p125 = scmp.eq.s32.totalorder %s17, 3
    %p126 = por %p124, %p125
    %p127 = scmp.ne.s32.totalorder %s118, %s119
    %p128 = scmp.eq.s32.totalorder %s17, 0
    %p129 = por %p127, %p128
    %p130 = scmp.ne.s32.totalorder %s118, %s119
    %p131 = scmp.eq.s32.totalorder %s18, 3
    %p132 = por %p130, %p131
    %p134 = scmp.ne.s32.totalorder %s119, %s133
    %p135 = scmp.eq.s32.totalorder %s18, 0
    %p136 = por %p134, %p135
    %s137 = ssub.s32 %s19, %s31
    %s138 = ssub.s32 %s20, %s27
    %s139 = sor.u32 %s137, %s138
    %p140 = scmp.eq.s32.totalorder %s139, 0
    %s142 = sadd.s32 %s141, 1
    %s143 = scalar_select %p140, %s141, %s142
    %p146 = pneg %p140
    %p147 = scmp.eq.s32.totalorder %s12, 3
    %p148 = por %p146, %p147
    %p149 = scmp.ne.s32.totalorder %s141, %s144
    %p150 = scmp.eq.s32.totalorder %s12, 0
    %p151 = por %p149, %p150
    %p152 = scmp.ne.s32.totalorder %s141, %s144
    %p153 = scmp.eq.s32.totalorder %s17, 3
    %p154 = por %p152, %p153
    %p155 = scmp.ne.s32.totalorder %s144, %s145
    %p156 = scmp.eq.s32.totalorder %s17, 0
    %p157 = por %p155, %p156
    %p158 = scmp.ne.s32.totalorder %s144, %s145
    %p159 = scmp.eq.s32.totalorder %s18, 3
    %p160 = por %p158, %p159
    %p162 = scmp.ne.s32.totalorder %s145, %s161
    %p163 = scmp.eq.s32.totalorder %s18, 0
    %p164 = por %p162, %p163
    %p165 = scmp.le.s32.totalorder 1, %s12
    %p166 = scmp.lt.s32.totalorder %s12, 5
    %p167 = pnand %p165, %p166
    %p168 = pneg %p167
    // Predicated region
    $region9: #{residual_block.1} parent=5 // pred_check
      _
    $region10: #{residual_block.1} parent=5 // pred_check_branch
      %170 = sbr.rel (%p167) target = $region12
    $region11: #{residual_block.1} parent=5 // pred_region
      %s171 = ssub.s32 %s12, 1
      // Predicated region
      $region13: #{residual_block.1} parent=11 // pred_check
        %p172 = pneg %p45
      $region14: #{residual_block.1} parent=11 // pred_check_branch
        %174 = sbr.rel (%p172) target = $region16
      $region15: #{residual_block.1} parent=11 // pred_region
        _
      $region16: #{residual_block.1} parent=11 // pred_fallthru
        _
      // Predicated region
      $region17: #{residual_block.1} parent=11 // pred_check
        %p175 = pneg %p66
      $region18: #{residual_block.1} parent=11 // pred_check_branch
        %177 = sbr.rel (%p175) target = $region20
      $region19: #{residual_block.1} parent=11 // pred_region
        _
      $region20: #{residual_block.1} parent=11 // pred_fallthru
        _
      // Predicated region
      $region21: #{residual_block.1} parent=11 // pred_check
        %p178 = pneg %p87
      $region22: #{residual_block.1} parent=11 // pred_check_branch
        %180 = sbr.rel (%p178) target = $region24
      $region23: #{residual_block.1} parent=11 // pred_region
        _
      $region24: #{residual_block.1} parent=11 // pred_fallthru
        _
      // Predicated region
      $region25: #{residual_block.1} parent=11 // pred_check
        %p181 = pneg %p108
      $region26: #{residual_block.1} parent=11 // pred_check_branch
        %183 = sbr.rel (%p181) target = $region28
      $region27: #{residual_block.1} parent=11 // pred_region
        _
      $region28: #{residual_block.1} parent=11 // pred_fallthru
        _
      // Predicated region
      $region29: #{residual_block.1} parent=11 // pred_check
        %p184 = pneg %p129
      $region30: #{residual_block.1} parent=11 // pred_check_branch
        %186 = sbr.rel (%p184) target = $region32
      $region31: #{residual_block.1} parent=11 // pred_region
        _
      $region32: #{residual_block.1} parent=11 // pred_fallthru
        _
    $region12: #{residual_block.1} parent=5 // pred_fallthru
      _
    %p187 = scmp.lt.s32.totalorder %s12, 4
    // Predicated region
    $region33: #{residual_block.1} parent=5 // pred_check
      %p188 = pneg %p187
    $region34: #{residual_block.1} parent=5 // pred_check_branch
      %190 = sbr.rel (%p188) target = $region36
    $region35: #{residual_block.1} parent=5 // pred_region
      _
    $region36: #{residual_block.1} parent=5 // pred_fallthru
      _
    %p191 = scmp.le.s32.totalorder 1, %s12
    %p192 = scmp.lt.s32.totalorder %s12, 5
    %p193 = pnand %p191, %p192
    %p194 = pneg %p193
    // Predicated region
    $region37: #{residual_block.1} parent=5 // pred_check
      _
    $region38: #{residual_block.1} parent=5 // pred_check_branch
      %196 = sbr.rel (%p193) target = $region40
    $region39: #{residual_block.1} parent=5 // pred_region
      %s197 = ssub.s32 %s12, 1
      %p198 = pneg %p45
      %p199 = pneg %p42
      %p200 = pneg %p66
      %p201 = pneg %p63
      %p202 = pneg %p87
      %p203 = pneg %p84
      %p204 = pneg %p108
      %p205 = pneg %p105
      %p206 = pneg %p129
      %p207 = pneg %p126
      %p208 = pneg %p157
      %p209 = pneg %p154
      %s210 = smul.u32 8, %s22
      %p211 = scmp.lt.s32.totalorder %s21, 1
      %s212 = scalar_select %p211, %s21, 1
      %p213 = scmp.lt.s32.totalorder %s210, 15
      %s214 = scalar_select %p213, %s210, 15
      %s215 = smul.addr %s212, 16
      %s216 = sadd.s32 %s214, %s215
      %s217 = smul.addr %s216, 4
      %s218 = scalar_lea.vmem %s6, %s217
      %s219 = smul.u32 8, %s22
      %p220 = scmp.lt.s32.totalorder %s21, 1
      %s221 = scalar_select %p220, %s21, 1
      %p222 = scmp.lt.s32.totalorder %s219, 15
      %s223 = scalar_select %p222, %s219, 15
      %s224 = smul.addr %s221, 16
      %s225 = sadd.s32 %s223, %s224
      %s226 = smul.addr %s225, 4
      %s227 = scalar_lea.vmem %s6, %s226
      %s228 = smul.u32 8, %s22
      %s229 = smul.u32 %s22, 8
      %s230 = smul.u32 %s22, 1024
      %s231 = sshra.s32 %s230, 7
      %s232 = sand.u32 %s230, 127
      %s233 = smul.u32 %s21, 20
      %s234 = sadd.s32 %s231, %s233
      %s235 = smul.addr %s234, 4
      %s236 = scalar_lea.vmem %s0, %s235
      %s237 = scalar_lea.vmem [#allocation2], 4
      %p239 = scmp.lt.u32.totalorder 48, 8
      %p240 = pneg %p239
      // Predicated region
      $region41: #{residual_block.1} parent=39 // pred_check
        _
      $region42: #{residual_block.1} parent=39 // pred_check_branch
        %242 = sbr.rel (%p239) target = $region44
      $region43: #{residual_block.1} parent=39 // pred_region
        %s257 = sand.u32 48, 7
        %p258 = scmp.eq.s32.totalorder %s257, 0
        // Predicated region
        $region56: #{residual_block.1} parent=43 // pred_check
          %p259 = pneg %p258
        $region57: #{residual_block.1} parent=43 // pred_check_branch
          %261 = sbr.rel (%p259) target = $region59
        $region58: #{residual_block.1} parent=43 // pred_region
          loop: start=0, step=1, limit=1
          $region60: #{residual_block.1} parent=58 // loop_pre_header
            _
          $region61: #{residual_block.1} parent=58 // loop_header
            %s263 = sphi 0, %s267
            %p264 = scmp.ge.s32.totalorder %s263, 1
            %s268 = sphi %s236, %s236
            %s269 = sphi %s237, %s237
          $region62: #{residual_block.1} parent=58 // loop_header_branch
            %266 = sbr.rel (%p264) target = $region66
          $region63: #{residual_block.1} parent=58 // loop_body
            %v270 = vld [vmem:[%s268] sm:$0xff]
            %271 = vst [vmem:[%s269] sm:$0xff] %v270
            %v272 = vld [vmem:[%s268 + $0x8] sm:$0xff]
            %273 = vst [vmem:[%s269 + $0x8] sm:$0xff] %v272
            %v274 = vld [vmem:[%s268 + $0x10] sm:$0xff]
            %275 = vst [vmem:[%s269 + $0x10] sm:$0xff] %v274
            %v276 = vld [vmem:[%s268 + $0x18] sm:$0xff]
            %277 = vst [vmem:[%s269 + $0x18] sm:$0xff] %v276
            %v278 = vld [vmem:[%s268 + $0x20] sm:$0xff]
            %279 = vst [vmem:[%s269 + $0x20] sm:$0xff] %v278
            %v280 = vld [vmem:[%s268 + $0x28] sm:$0xff]
            %281 = vst [vmem:[%s269 + $0x28] sm:$0xff] %v280
          $region64: #{residual_block.1} parent=58 // loop_footer
            %s267 = sadd.s32 1, %s263
          $region65: #{residual_block.1} parent=58 // loop_footer_branch
            %262 = sbr.rel target = $region61
          $region66: #{residual_block.1} parent=58 // loop_exit
            _
        $region59: #{residual_block.1} parent=43 // pred_fallthru
          _
        %p282 = pneg %p258
        // Predicated region
        $region67: #{residual_block.1} parent=43 // pred_check
          _
        $region68: #{residual_block.1} parent=43 // pred_check_branch
          %284 = sbr.rel (%p258) target = $region70
        $region69: #{residual_block.1} parent=43 // pred_region
          %s285 = sand.u32 48, 7
        $region70: #{residual_block.1} parent=43 // pred_fallthru
          _
      $region44: #{residual_block.1} parent=39 // pred_fallthru
        _
      // Predicated region
      $region45: #{residual_block.1} parent=39 // pred_check
        %p243 = pneg %p239
      $region46: #{residual_block.1} parent=39 // pred_check_branch
        %245 = sbr.rel (%p243) target = $region48
      $region47: #{residual_block.1} parent=39 // pred_region
        %s246 = sshllo.u32 0, 48
        loop: start=0, step=1, limit=1
        $region49: #{residual_block.1} parent=47 // loop_pre_header
          _
        $region50: #{residual_block.1} parent=47 // loop_header
          %s248 = sphi 0, %s252
          %p249 = scmp.ge.s32.totalorder %s248, 1
          %s253 = sphi %s236, %s236
          %s254 = sphi %s237, %s237
        $region51: #{residual_block.1} parent=47 // loop_header_branch
          %251 = sbr.rel (%p249) target = $region55
        $region52: #{residual_block.1} parent=47 // loop_body
          %v255 = vld [vmem:[%s253] sm:%s246]
          %256 = vst [vmem:[%s254] sm:%s246] %v255
        $region53: #{residual_block.1} parent=47 // loop_footer
          %s252 = sadd.s32 1, %s248
        $region54: #{residual_block.1} parent=47 // loop_footer_branch
          %247 = sbr.rel target = $region50
        $region55: #{residual_block.1} parent=47 // loop_exit
          _
      $region48: #{residual_block.1} parent=39 // pred_fallthru
        _
      // Predicated region
      $region71: #{residual_block.1} parent=39 // pred_check
        _
      $region72: #{residual_block.1} parent=39 // pred_check_branch
        %288 = sbr.rel (0) target = $region74
      $region73: #{residual_block.1} parent=39 // pred_region
        %289 = vsyncadd [#allocation4], 768
      $region74: #{residual_block.1} parent=39 // pred_fallthru
        _
      %290 = vst [vmem:[#allocation2] sm:$0xf] 0.0
      %291 = vst [vmem:[#allocation2 + $0x34] sm:$0xf] 0.0
      %292 = vst [vmem:[#allocation3] sm:$0xf] 0.0
      %293 = vst [vmem:[#allocation3 + $0x2c] sm:$0xf] 0.0
      %s294 = smul.u32 4, 1
      %s295 = smul.u32 %s294, 12
      %s296 = sshll.u32 %s295, 4
      %297 = dma.done [#allocation4], %s296
      %v298 = vld [vmem:[#allocation2] sm:$0xff]
      %v299 = vld [vmem:[#allocation2 + $0x8] sm:$0xff]
      %v300 = vld [vmem:[#allocation2 + $0x10] sm:$0xff]
      %v301 = vld [vmem:[#allocation2 + $0x18] sm:$0xff]
      %v302 = vld [vmem:[#allocation2 + $0x20] sm:$0xff]
      %v303 = vld [vmem:[#allocation2 + $0x28] sm:$0xff]
      %v304 = vld [vmem:[#allocation2 + $0x30] sm:$0xff]
      %v311 = vcombine.high %v298, %v298
      %v312 = vcombine.high %v299, %v299
      %v313 = vcombine.high %v300, %v300
      %v314 = vcombine.high %v301, %v301
      %v315 = vcombine.high %v302, %v302
      %v321 = vcombine.low %v299, %v299
      %v322 = vcombine.low %v300, %v300
      %v323 = vcombine.low %v301, %v301
      %v324 = vcombine.low %v302, %v302
      %v325 = vcombine.low %v303, %v303
      %326 = vrot.lane.b32.xlu0 %v298, 127
      %v327 = vpop.permute.xlu0 %326
      %328 = vrot.lane.b32.xlu0 %v321, 127
      %v329 = vpop.permute.xlu0 %328
      %330 = vrot.lane.b32.xlu0 %v299, 127
      %v331 = vpop.permute.xlu0 %330
      %332 = vrot.lane.b32.xlu0 %v322, 127
      %v333 = vpop.permute.xlu0 %332
      %334 = vrot.lane.b32.xlu0 %v300, 127
      %v335 = vpop.permute.xlu0 %334
      %336 = vrot.lane.b32.xlu0 %v323, 127
      %v337 = vpop.permute.xlu0 %336
      %338 = vrot.lane.b32.xlu0 %v301, 127
      %v339 = vpop.permute.xlu0 %338
      %340 = vrot.lane.b32.xlu0 %v324, 127
      %v341 = vpop.permute.xlu0 %340
      %342 = vrot.lane.b32.xlu0 %v302, 127
      %v343 = vpop.permute.xlu0 %342
      %344 = vrot.lane.b32.xlu0 %v325, 127
      %v345 = vpop.permute.xlu0 %344
      %vm346 = vcmask 1039360
      %v347 = vsel %vm346, %v327, %v329
      %v348 = vsel %vm346, %v329, %v331
      %v349 = vsel %vm346, %v331, %v333
      %v350 = vsel %vm346, %v333, %v335
      %v351 = vsel %vm346, %v335, %v337
      %v352 = vsel %vm346, %v337, %v339
      %v353 = vsel %vm346, %v339, %v341
      %v354 = vsel %vm346, %v341, %v343
      %v355 = vsel %vm346, %v343, %v345
      %v367 = vcombine.high %v303, %v303
      %368 = vrot.lane.b32.xlu0 %v311, 126
      %v369 = vpop.permute.xlu0 %368
      %370 = vrot.lane.b32.xlu0 %v299, 126
      %v371 = vpop.permute.xlu0 %370
      %372 = vrot.lane.b32.xlu0 %v312, 126
      %v373 = vpop.permute.xlu0 %372
      %374 = vrot.lane.b32.xlu0 %v300, 126
      %v375 = vpop.permute.xlu0 %374
      %376 = vrot.lane.b32.xlu0 %v313, 126
      %v377 = vpop.permute.xlu0 %376
      %378 = vrot.lane.b32.xlu0 %v301, 126
      %v379 = vpop.permute.xlu0 %378
      %380 = vrot.lane.b32.xlu0 %v314, 126
      %v381 = vpop.permute.xlu0 %380
      %382 = vrot.lane.b32.xlu0 %v302, 126
      %v383 = vpop.permute.xlu0 %382
      %384 = vrot.lane.b32.xlu0 %v315, 126
      %v385 = vpop.permute.xlu0 %384
      %386 = vrot.lane.b32.xlu0 %v303, 126
      %v387 = vpop.permute.xlu0 %386
      %388 = vrot.lane.b32.xlu0 %v367, 126
      %v389 = vpop.permute.xlu0 %388
      %vm390 = vcmask 1031168
      %v391 = vsel %vm390, %v369, %v371
      %v392 = vsel %vm390, %v371, %v373
      %v393 = vsel %vm390, %v373, %v375
      %v394 = vsel %vm390, %v375, %v377
      %v395 = vsel %vm390, %v377, %v379
      %v396 = vsel %vm390, %v379, %v381
      %v397 = vsel %vm390, %v381, %v383
      %v398 = vsel %vm390, %v383, %v385
      %v399 = vsel %vm390, %v385, %v387
      %v400 = vsel %vm390, %v387, %v389
      %417 = vrot.lane.b32.xlu0 %v312, 127
      %v418 = vpop.permute.xlu0 %417
      %419 = vrot.lane.b32.xlu0 %v313, 127
      %v420 = vpop.permute.xlu0 %419
      %421 = vrot.lane.b32.xlu0 %v314, 127
      %v422 = vpop.permute.xlu0 %421
      %423 = vrot.lane.b32.xlu0 %v315, 127
      %v424 = vpop.permute.xlu0 %423
      %425 = vrot.lane.b32.xlu0 %v303, 127
      %v426 = vpop.permute.xlu0 %425
      %427 = vrot.lane.b32.xlu0 %v367, 127
      %v428 = vpop.permute.xlu0 %427
      %v429 = vsel %vm346, %v331, %v418
      %v430 = vsel %vm346, %v418, %v335
      %v431 = vsel %vm346, %v335, %v420
      %v432 = vsel %vm346, %v420, %v339
      %v433 = vsel %vm346, %v339, %v422
      %v434 = vsel %vm346, %v422, %v343
      %v435 = vsel %vm346, %v343, %v424
      %v436 = vsel %vm346, %v424, %v426
      %v437 = vsel %vm346, %v426, %v428
      %v450 = vcombine.low %v304, %v304
      %451 = vrot.lane.b32.xlu0 %v321, 126
      %v452 = vpop.permute.xlu0 %451
      %453 = vrot.lane.b32.xlu0 %v322, 126
      %v454 = vpop.permute.xlu0 %453
      %455 = vrot.lane.b32.xlu0 %v323, 126
      %v456 = vpop.permute.xlu0 %455
      %457 = vrot.lane.b32.xlu0 %v324, 126
      %v458 = vpop.permute.xlu0 %457
      %459 = vrot.lane.b32.xlu0 %v325, 126
      %v460 = vpop.permute.xlu0 %459
      %461 = vrot.lane.b32.xlu0 %v450, 126
      %v462 = vpop.permute.xlu0 %461
      %v463 = vsel %vm390, %v452, %v371
      %v464 = vsel %vm390, %v371, %v454
      %v465 = vsel %vm390, %v454, %v375
      %v466 = vsel %vm390, %v375, %v456
      %v467 = vsel %vm390, %v456, %v379
      %v468 = vsel %vm390, %v379, %v458
      %v469 = vsel %vm390, %v458, %v383
      %v470 = vsel %vm390, %v383, %v460
      %v471 = vsel %vm390, %v460, %v387
      %v472 = vsel %vm390, %v387, %v462
      %485 = vrot.lane.b32.xlu0 %v450, 127
      %v486 = vpop.permute.xlu0 %485
      %v487 = vsel %vm346, %v345, %v426
      %v488 = vsel %vm346, %v426, %v486
      %v492 = vcombine.high %v304, %v304
      %493 = vrot.lane.b32.xlu0 %v304, 126
      %v494 = vpop.permute.xlu0 %493
      %495 = vrot.lane.b32.xlu0 %v492, 126
      %v496 = vpop.permute.xlu0 %495
      %v497 = vsel %vm390, %v389, %v494
      %v498 = vsel %vm390, %v494, %v496
      %vm499 = vcmask 1043456
      %v500 = vsel %vm499, %v298, %v327
      %v501 = vsel %vm499, %v311, %v347
      %v502 = vsel %vm499, %v299, %v348
      %v503 = vsel %vm499, %v312, %v349
      %v504 = vsel %vm499, %v300, %v350
      %v505 = vsel %vm499, %v313, %v351
      %v506 = vsel %vm499, %v301, %v352
      %v507 = vsel %vm499, %v314, %v353
      %v508 = vsel %vm499, %v302, %v354
      %v509 = vsel %vm499, %v315, %v355
      %v510 = vsel %vm499, %v303, %v345
      %v511 = vsel %vm499, %v369, %v298
      %v512 = vsel %vm499, %v391, %v321
      %v513 = vsel %vm499, %v392, %v299
      %v514 = vsel %vm499, %v393, %v322
      %v515 = vsel %vm499, %v394, %v300
      %v516 = vsel %vm499, %v395, %v323
      %v517 = vsel %vm499, %v396, %v301
      %v518 = vsel %vm499, %v397, %v324
      %v519 = vsel %vm499, %v398, %v302
      %v520 = vsel %vm499, %v399, %v325
      %v521 = vsel %vm499, %v400, %v303
      %v522 = vsel %vm499, %v331, %v452
      %v523 = vsel %vm499, %v429, %v463
      %v524 = vsel %vm499, %v430, %v464
      %v525 = vsel %vm499, %v431, %v465
      %v526 = vsel %vm499, %v432, %v466
      %v527 = vsel %vm499, %v433, %v467
      %v528 = vsel %vm499, %v434, %v468
      %v529 = vsel %vm499, %v435, %v469
      %v530 = vsel %vm499, %v436, %v470
      %v531 = vsel %vm499, %v437, %v471
      %v532 = vsel %vm499, %v428, %v472
      %v533 = vsel %vm499, %v299, %v331
      %v534 = vsel %vm499, %v303, %v487
      %v535 = vsel %vm499, %v367, %v488
      %v536 = vsel %vm499, %v304, %v486
      %v537 = vld [vmem:[%s1] sm:$0xf]
      %v538 = vld [vmem:[%s2] sm:$0xf]
      %540 = vset.pattern.permute.xlu0 0
      %541 = vperm.xlu0 %540, %v538
      %v542 = vpop.permute.xlu0 %541
      %581 = vrot.lane.b32.xlu0 %v500, 1
      %v582 = vpop.permute.xlu0 %581
      %583 = vrot.lane.b32.xlu0 %v501, 1
      %v584 = vpop.permute.xlu0 %583
      %585 = vrot.lane.b32.xlu0 %v502, 1
      %v586 = vpop.permute.xlu0 %585
      %587 = vrot.lane.b32.xlu0 %v503, 1
      %v588 = vpop.permute.xlu0 %587
      %589 = vrot.lane.b32.xlu0 %v504, 1
      %v590 = vpop.permute.xlu0 %589
      %591 = vrot.lane.b32.xlu0 %v505, 1
      %v592 = vpop.permute.xlu0 %591
      %593 = vrot.lane.b32.xlu0 %v506, 1
      %v594 = vpop.permute.xlu0 %593
      %595 = vrot.lane.b32.xlu0 %v507, 1
      %v596 = vpop.permute.xlu0 %595
      %597 = vrot.lane.b32.xlu0 %v508, 1
      %v598 = vpop.permute.xlu0 %597
      %599 = vrot.lane.b32.xlu0 %v509, 1
      %v600 = vpop.permute.xlu0 %599
      %601 = vrot.lane.b32.xlu0 %v510, 1
      %v602 = vpop.permute.xlu0 %601
      %603 = vrot.lane.b32.xlu0 %v511, 1
      %v604 = vpop.permute.xlu0 %603
      %605 = vrot.lane.b32.xlu0 %v512, 1
      %v606 = vpop.permute.xlu0 %605
      %607 = vrot.lane.b32.xlu0 %v513, 1
      %v608 = vpop.permute.xlu0 %607
      %609 = vrot.lane.b32.xlu0 %v514, 1
      %v610 = vpop.permute.xlu0 %609
      %611 = vrot.lane.b32.xlu0 %v515, 1
      %v612 = vpop.permute.xlu0 %611
      %613 = vrot.lane.b32.xlu0 %v516, 1
      %v614 = vpop.permute.xlu0 %613
      %615 = vrot.lane.b32.xlu0 %v517, 1
      %v616 = vpop.permute.xlu0 %615
      %617 = vrot.lane.b32.xlu0 %v518, 1
      %v618 = vpop.permute.xlu0 %617
      %619 = vrot.lane.b32.xlu0 %v519, 1
      %v620 = vpop.permute.xlu0 %619
      %621 = vrot.lane.b32.xlu0 %v520, 1
      %v622 = vpop.permute.xlu0 %621
      %623 = vrot.lane.b32.xlu0 %v521, 1
      %v624 = vpop.permute.xlu0 %623
      %625 = vrot.lane.b32.xlu0 %v522, 1
      %v626 = vpop.permute.xlu0 %625
      %627 = vrot.lane.b32.xlu0 %v523, 1
      %v628 = vpop.permute.xlu0 %627
      %629 = vrot.lane.b32.xlu0 %v524, 1
      %v630 = vpop.permute.xlu0 %629
      %631 = vrot.lane.b32.xlu0 %v525, 1
      %v632 = vpop.permute.xlu0 %631
      %633 = vrot.lane.b32.xlu0 %v526, 1
      %v634 = vpop.permute.xlu0 %633
      %635 = vrot.lane.b32.xlu0 %v527, 1
      %v636 = vpop.permute.xlu0 %635
      %637 = vrot.lane.b32.xlu0 %v528, 1
      %v638 = vpop.permute.xlu0 %637
      %639 = vrot.lane.b32.xlu0 %v529, 1
      %v640 = vpop.permute.xlu0 %639
      %641 = vrot.lane.b32.xlu0 %v530, 1
      %v642 = vpop.permute.xlu0 %641
      %643 = vrot.lane.b32.xlu0 %v531, 1
      %v644 = vpop.permute.xlu0 %643
      %645 = vrot.lane.b32.xlu0 %v532, 1
      %v646 = vpop.permute.xlu0 %645
      %647 = vrot.lane.b32.xlu0 %v533, 1
      %v648 = vpop.permute.xlu0 %647
      %649 = vrot.lane.b32.xlu0 %v534, 1
      %v650 = vpop.permute.xlu0 %649
      %651 = vrot.lane.b32.xlu0 %v535, 1
      %v652 = vpop.permute.xlu0 %651
      %653 = vrot.lane.b32.xlu0 %v536, 1
      %v654 = vpop.permute.xlu0 %653
      %655 = vrot.lane.b32.xlu0 %v373, 1
      %v656 = vpop.permute.xlu0 %655
      %657 = vrot.lane.b32.xlu0 %v393, 1
      %v658 = vpop.permute.xlu0 %657
      %659 = vrot.lane.b32.xlu0 %v394, 1
      %v660 = vpop.permute.xlu0 %659
      %661 = vrot.lane.b32.xlu0 %v395, 1
      %v662 = vpop.permute.xlu0 %661
      %663 = vrot.lane.b32.xlu0 %v396, 1
      %v664 = vpop.permute.xlu0 %663
      %665 = vrot.lane.b32.xlu0 %v397, 1
      %v666 = vpop.permute.xlu0 %665
      %667 = vrot.lane.b32.xlu0 %v398, 1
      %v668 = vpop.permute.xlu0 %667
      %669 = vrot.lane.b32.xlu0 %v399, 1
      %v670 = vpop.permute.xlu0 %669
      %671 = vrot.lane.b32.xlu0 %v400, 1
      %v672 = vpop.permute.xlu0 %671
      %673 = vrot.lane.b32.xlu0 %v497, 1
      %v674 = vpop.permute.xlu0 %673
      %675 = vrot.lane.b32.xlu0 %v498, 1
      %v676 = vpop.permute.xlu0 %675
      %vm677 = vcmask 7168
      %v678 = vsel %vm677, %v582, %v584
      %v679 = vsel %vm677, %v584, %v586
      %v680 = vsel %vm677, %v586, %v588
      %v681 = vsel %vm677, %v588, %v590
      %v682 = vsel %vm677, %v590, %v592
      %v683 = vsel %vm677, %v592, %v594
      %v684 = vsel %vm677, %v594, %v596
      %v685 = vsel %vm677, %v596, %v598
      %v686 = vsel %vm677, %v598, %v600
      %v687 = vsel %vm677, %v600, %v602
      %v688 = vsel %vm677, %v604, %v606
      %v689 = vsel %vm677, %v606, %v608
      %v690 = vsel %vm677, %v608, %v610
      %v691 = vsel %vm677, %v610, %v612
      %v692 = vsel %vm677, %v612, %v614
      %v693 = vsel %vm677, %v614, %v616
      %v694 = vsel %vm677, %v616, %v618
      %v695 = vsel %vm677, %v618, %v620
      %v696 = vsel %vm677, %v620, %v622
      %v697 = vsel %vm677, %v622, %v624
      %v698 = vsel %vm677, %v626, %v628
      %v699 = vsel %vm677, %v628, %v630
      %v700 = vsel %vm677, %v630, %v632
      %v701 = vsel %vm677, %v632, %v634
      %v702 = vsel %vm677, %v634, %v636
      %v703 = vsel %vm677, %v636, %v638
      %v704 = vsel %vm677, %v638, %v640
      %v705 = vsel %vm677, %v640, %v642
      %v706 = vsel %vm677, %v642, %v644
      %v707 = vsel %vm677, %v644, %v646
      %v708 = vsel %vm677, %v648, %v588
      %v709 = vsel %vm677, %v600, %v650
      %v710 = vsel %vm677, %v650, %v652
      %v711 = vsel %vm677, %v652, %v654
      %v712 = vsel %vm677, %v656, %v658
      %v713 = vsel %vm677, %v658, %v660
      %v714 = vsel %vm677, %v660, %v662
      %v715 = vsel %vm677, %v662, %v664
      %v716 = vsel %vm677, %v664, %v666
      %v717 = vsel %vm677, %v666, %v668
      %v718 = vsel %vm677, %v668, %v670
      %v719 = vsel %vm677, %v670, %v672
      %v720 = vsel %vm677, %v672, %v674
      %v721 = vsel %vm677, %v674, %v676
      %vm756 = vcmask 293888
      %v758 = vsel %vm756, %v537, 0
      %v760 = vsel %vm499, %v712, 0
      %v762 = vsel %vm499, %v713, 0
      %v764 = vsel %vm499, %v714, 0
      %v766 = vsel %vm499, %v715, 0
      %v768 = vsel %vm499, %v716, 0
      %v770 = vsel %vm499, %v717, 0
      %v772 = vsel %vm499, %v718, 0
      %v774 = vsel %vm499, %v719, 0
      %v776 = vsel %vm499, %v720, 0
      %v778 = vsel %vm499, %v721, 0
      %780 = vmatprep.subr.mxu0 %v679
      %781 = vmatpush1.msra.mxu0 %v678
      %782 = vmatprep.subr.mxu0 %v689
      %783 = vmatpush1.msra.mxu0 %v688
      %784 = vmatprep.subr.mxu0 %v699
      %785 = vmatpush1.msra.mxu0 %v698
      %786 = vmatprep.subr.mxu0 %v681
      %787 = vmatpush1.msra.mxu0 %v708
      %788 = vmatprep.subr.mxu0 %v762
      %789 = vmatpush1.msra.mxu0 %v760
      %790 = vmatprep.subr.mxu0 0.0
      %791 = vmatpush1.msra.mxu0 0.0
      %792 = vmatprep.subr.mxu0 0.0
      %793 = vmatpush1.msra.mxu0 0.0
      %794 = vmatprep.subr.mxu0 0.0
      %795 = vmatpush1.msra.mxu0 0.0
      %796 = vmatprep.subr.mxu0 0.0
      %797 = vmatpush1.msra.mxu0 0.0
      %798 = vmatprep.subr.mxu0 0.0
      %799 = vmatpush1.msra.mxu0 0.0
      %800 = vmatprep.subr.mxu0 0.0
      %801 = vmatpush1.msra.mxu0 0.0
      %802 = vmatprep.subr.mxu0 0.0
      %803 = vmatpush1.msra.mxu0 0.0
      %804 = vmatprep.subr.mxu0 0.0
      %805 = vmatpush1.msra.mxu0 0.0
      %806 = vmatprep.subr.mxu0 0.0
      %807 = vmatpush1.msra.mxu0 0.0
      %808 = vmatprep.subr.mxu0 0.0
      %809 = vmatpush1.msra.mxu0 0.0
      %810 = vmatprep.subr.mxu0 0.0
      %811 = vmatpush1.msra.mxu0 0.0
      %812 = vmatprep.subr.mxu0 0.0
      %813 = vmatpush1.msra.mxu0 0.0
      %814 = vmatprep.subr.mxu0 0.0
      %815 = vmatpush1.msra.mxu0 0.0
      %816 = vmatprep.subr.mxu0 0.0
      %817 = vmatpush1.msra.mxu0 0.0
      %818 = vmatprep.subr.mxu0 0.0
      %819 = vmatpush1.msra.mxu0 0.0
      %820 = vmatprep.subr.mxu0 0.0
      %821 = vmatpush1.msra.mxu0 0.0
      %822 = vmatprep.subr.mxu0 0.0
      %823 = vmatpush1.msra.mxu0 0.0
      %824 = vmatprep.subr.mxu0 0.0
      %825 = vmatpush1.msra.mxu0 0.0
      %826 = vmatprep.subr.mxu0 0.0
      %827 = vmatpush1.msra.mxu0 0.0
      %828 = vmatprep.subr.mxu0 0.0
      %829 = vmatpush1.msra.mxu0 0.0
      %830 = vmatprep.subr.mxu0 0.0
      %831 = vmatpush1.msra.mxu0 0.0
      %832 = vmatprep.subr.mxu0 0.0
      %833 = vmatpush1.msra.mxu0 0.0
      %834 = vmatprep.subr.mxu0 0.0
      %835 = vmatpush1.msra.mxu0 0.0
      %836 = vmatprep.subr.mxu0 0.0
      %837 = vmatpush1.msra.mxu0 0.0
      %838 = vmatprep.subr.mxu0 0.0
      %839 = vmatpush1.msra.mxu0 0.0
      %840 = vmatprep.subr.mxu0 0.0
      %841 = vmatpush1.msra.mxu0 0.0
      %842 = vmatprep.subr.mxu0 0.0
      %843 = vmatpush1.msra.mxu0 0.0
      %844 = vmatprep.mubr.f32.mxu0 0.0
      %845 = vmatmul.mubr.f32.gmra.mrb[0].mxu0 %v758
      %v846 = vpop.f32.mrb[0].mxu0
      %v847 = vadd.f32 %v542, %v846
      %v848 = vpop.f32.mrb[0].mxu0
      %v849 = vadd.f32 %v542, %v848
      %850 = vdwg.mxu0
      %851 = vmatprep.subr.mxu0 %v681
      %852 = vmatpush1.msra.mxu0 %v680
      %853 = vmatprep.subr.mxu0 %v691
      %854 = vmatpush1.msra.mxu0 %v690
      %855 = vmatprep.subr.mxu0 %v701
      %856 = vmatpush1.msra.mxu0 %v700
      %857 = vmatprep.subr.mxu0 %v683
      %858 = vmatpush1.msra.mxu0 %v682
      %859 = vmatprep.subr.mxu0 %v766
      %860 = vmatpush1.msra.mxu0 %v764
      %861 = vmatprep.subr.mxu0 0.0
      %862 = vmatpush1.msra.mxu0 0.0
      %863 = vmatprep.subr.mxu0 0.0
      %864 = vmatpush1.msra.mxu0 0.0
      %865 = vmatprep.subr.mxu0 0.0
      %866 = vmatpush1.msra.mxu0 0.0
      %867 = vmatprep.subr.mxu0 0.0
      %868 = vmatpush1.msra.mxu0 0.0
      %869 = vmatprep.subr.mxu0 0.0
      %870 = vmatpush1.msra.mxu0 0.0
      %871 = vmatprep.subr.mxu0 0.0
      %872 = vmatpush1.msra.mxu0 0.0
      %873 = vmatprep.subr.mxu0 0.0
      %874 = vmatpush1.msra.mxu0 0.0
      %875 = vmatprep.subr.mxu0 0.0
      %876 = vmatpush1.msra.mxu0 0.0
      %877 = vmatprep.subr.mxu0 0.0
      %878 = vmatpush1.msra.mxu0 0.0
      %879 = vmatprep.subr.mxu0 0.0
      %880 = vmatpush1.msra.mxu0 0.0
      %881 = vmatprep.subr.mxu0 0.0
      %882 = vmatpush1.msra.mxu0 0.0
      %883 = vmatprep.subr.mxu0 0.0
      %884 = vmatpush1.msra.mxu0 0.0
      %885 = vmatprep.subr.mxu0 0.0
      %886 = vmatpush1.msra.mxu0 0.0
      %887 = vmatprep.subr.mxu0 0.0
      %888 = vmatpush1.msra.mxu0 0.0
      %889 = vmatprep.subr.mxu0 0.0
      %890 = vmatpush1.msra.mxu0 0.0
      %891 = vmatprep.subr.mxu0 0.0
      %892 = vmatpush1.msra.mxu0 0.0
      %893 = vmatprep.subr.mxu0 0.0
      %894 = vmatpush1.msra.mxu0 0.0
      %895 = vmatprep.subr.mxu0 0.0
      %896 = vmatpush1.msra.mxu0 0.0
      %897 = vmatprep.subr.mxu0 0.0
      %898 = vmatpush1.msra.mxu0 0.0
      %899 = vmatprep.subr.mxu0 0.0
      %900 = vmatpush1.msra.mxu0 0.0
      %901 = vmatprep.subr.mxu0 0.0
      %902 = vmatpush1.msra.mxu0 0.0
      %903 = vmatprep.subr.mxu0 0.0
      %904 = vmatpush1.msra.mxu0 0.0
      %905 = vmatprep.subr.mxu0 0.0
      %906 = vmatpush1.msra.mxu0 0.0
      %907 = vmatprep.subr.mxu0 0.0
      %908 = vmatpush1.msra.mxu0 0.0
      %909 = vmatprep.subr.mxu0 0.0
      %910 = vmatpush1.msra.mxu0 0.0
      %911 = vmatprep.subr.mxu0 0.0
      %912 = vmatpush1.msra.mxu0 0.0
      %913 = vmatprep.subr.mxu0 0.0
      %914 = vmatpush1.msra.mxu0 0.0
      %915 = vmatprep.mubr.f32.mxu0 0.0
      %916 = vmatmul.mubr.f32.gmra.mrb[0].mxu0 %v758
      %v917 = vpop.f32.mrb[0].mxu0
      %v918 = vadd.f32 %v542, %v917
      %v919 = vpop.f32.mrb[0].mxu0
      %v920 = vadd.f32 %v542, %v919
      %921 = vdwg.mxu0
      %922 = vmatprep.subr.mxu0 %v683
      %923 = vmatpush1.msra.mxu0 %v682
      %924 = vmatprep.subr.mxu0 %v693
      %925 = vmatpush1.msra.mxu0 %v692
      %926 = vmatprep.subr.mxu0 %v703
      %927 = vmatpush1.msra.mxu0 %v702
      %928 = vmatprep.subr.mxu0 %v685
      %929 = vmatpush1.msra.mxu0 %v684
      %930 = vmatprep.subr.mxu0 %v770
      %931 = vmatpush1.msra.mxu0 %v768
      %932 = vmatprep.subr.mxu0 0.0
      %933 = vmatpush1.msra.mxu0 0.0
      %934 = vmatprep.subr.mxu0 0.0
      %935 = vmatpush1.msra.mxu0 0.0
      %936 = vmatprep.subr.mxu0 0.0
      %937 = vmatpush1.msra.mxu0 0.0
      %938 = vmatprep.subr.mxu0 0.0
      %939 = vmatpush1.msra.mxu0 0.0
      %940 = vmatprep.subr.mxu0 0.0
      %941 = vmatpush1.msra.mxu0 0.0
      %942 = vmatprep.subr.mxu0 0.0
      %943 = vmatpush1.msra.mxu0 0.0
      %944 = vmatprep.subr.mxu0 0.0
      %945 = vmatpush1.msra.mxu0 0.0
      %946 = vmatprep.subr.mxu0 0.0
      %947 = vmatpush1.msra.mxu0 0.0
      %948 = vmatprep.subr.mxu0 0.0
      %949 = vmatpush1.msra.mxu0 0.0
      %950 = vmatprep.subr.mxu0 0.0
      %951 = vmatpush1.msra.mxu0 0.0
      %952 = vmatprep.subr.mxu0 0.0
      %953 = vmatpush1.msra.mxu0 0.0
      %954 = vmatprep.subr.mxu0 0.0
      %955 = vmatpush1.msra.mxu0 0.0
      %956 = vmatprep.subr.mxu0 0.0
      %957 = vmatpush1.msra.mxu0 0.0
      %958 = vmatprep.subr.mxu0 0.0
      %959 = vmatpush1.msra.mxu0 0.0
      %960 = vmatprep.subr.mxu0 0.0
      %961 = vmatpush1.msra.mxu0 0.0
      %962 = vmatprep.subr.mxu0 0.0
      %963 = vmatpush1.msra.mxu0 0.0
      %964 = vmatprep.subr.mxu0 0.0
      %965 = vmatpush1.msra.mxu0 0.0
      %966 = vmatprep.subr.mxu0 0.0
      %967 = vmatpush1.msra.mxu0 0.0
      %968 = vmatprep.subr.mxu0 0.0
      %969 = vmatpush1.msra.mxu0 0.0
      %970 = vmatprep.subr.mxu0 0.0
      %971 = vmatpush1.msra.mxu0 0.0
      %972 = vmatprep.subr.mxu0 0.0
      %973 = vmatpush1.msra.mxu0 0.0
      %974 = vmatprep.subr.mxu0 0.0
      %975 = vmatpush1.msra.mxu0 0.0
      %976 = vmatprep.subr.mxu0 0.0
      %977 = vmatpush1.msra.mxu0 0.0
      %978 = vmatprep.subr.mxu0 0.0
      %979 = vmatpush1.msra.mxu0 0.0
      %980 = vmatprep.subr.mxu0 0.0
      %981 = vmatpush1.msra.mxu0 0.0
      %982 = vmatprep.subr.mxu0 0.0
      %983 = vmatpush1.msra.mxu0 0.0
      %984 = vmatprep.subr.mxu0 0.0
      %985 = vmatpush1.msra.mxu0 0.0
      %986 = vmatprep.mubr.f32.mxu0 0.0
      %987 = vmatmul.mubr.f32.gmra.mrb[0].mxu0 %v758
      %v988 = vpop.f32.mrb[0].mxu0
      %v989 = vadd.f32 %v542, %v988
      %v990 = vpop.f32.mrb[0].mxu0
      %v991 = vadd.f32 %v542, %v990
      %992 = vdwg.mxu0
      %993 = vmatprep.subr.mxu0 %v685
      %994 = vmatpush1.msra.mxu0 %v684
      %995 = vmatprep.subr.mxu0 %v695
      %996 = vmatpush1.msra.mxu0 %v694
      %997 = vmatprep.subr.mxu0 %v705
      %998 = vmatpush1.msra.mxu0 %v704
      %999 = vmatprep.subr.mxu0 %v709
      %1000 = vmatpush1.msra.mxu0 %v686
      %1001 = vmatprep.subr.mxu0 %v774
      %1002 = vmatpush1.msra.mxu0 %v772
      %1003 = vmatprep.subr.mxu0 0.0
      %1004 = vmatpush1.msra.mxu0 0.0
      %1005 = vmatprep.subr.mxu0 0.0
      %1006 = vmatpush1.msra.mxu0 0.0
      %1007 = vmatprep.subr.mxu0 0.0
      %1008 = vmatpush1.msra.mxu0 0.0
      %1009 = vmatprep.subr.mxu0 0.0
      %1010 = vmatpush1.msra.mxu0 0.0
      %1011 = vmatprep.subr.mxu0 0.0
      %1012 = vmatpush1.msra.mxu0 0.0
      %1013 = vmatprep.subr.mxu0 0.0
      %1014 = vmatpush1.msra.mxu0 0.0
      %1015 = vmatprep.subr.mxu0 0.0
      %1016 = vmatpush1.msra.mxu0 0.0
      %1017 = vmatprep.subr.mxu0 0.0
      %1018 = vmatpush1.msra.mxu0 0.0
      %1019 = vmatprep.subr.mxu0 0.0
      %1020 = vmatpush1.msra.mxu0 0.0
      %1021 = vmatprep.subr.mxu0 0.0
      %1022 = vmatpush1.msra.mxu0 0.0
      %1023 = vmatprep.subr.mxu0 0.0
      %1024 = vmatpush1.msra.mxu0 0.0
      %1025 = vmatprep.subr.mxu0 0.0
      %1026 = vmatpush1.msra.mxu0 0.0
      %1027 = vmatprep.subr.mxu0 0.0
      %1028 = vmatpush1.msra.mxu0 0.0
      %1029 = vmatprep.subr.mxu0 0.0
      %1030 = vmatpush1.msra.mxu0 0.0
      %1031 = vmatprep.subr.mxu0 0.0
      %1032 = vmatpush1.msra.mxu0 0.0
      %1033 = vmatprep.subr.mxu0 0.0
      %1034 = vmatpush1.msra.mxu0 0.0
      %1035 = vmatprep.subr.mxu0 0.0
      %1036 = vmatpush1.msra.mxu0 0.0
      %1037 = vmatprep.subr.mxu0 0.0
      %1038 = vmatpush1.msra.mxu0 0.0
      %1039 = vmatprep.subr.mxu0 0.0
      %1040 = vmatpush1.msra.mxu0 0.0
      %1041 = vmatprep.subr.mxu0 0.0
      %1042 = vmatpush1.msra.mxu0 0.0
      %1043 = vmatprep.subr.mxu0 0.0
      %1044 = vmatpush1.msra.mxu0 0.0
      %1045 = vmatprep.subr.mxu0 0.0
      %1046 = vmatpush1.msra.mxu0 0.0
      %1047 = vmatprep.subr.mxu0 0.0
      %1048 = vmatpush1.msra.mxu0 0.0
      %1049 = vmatprep.subr.mxu0 0.0
      %1050 = vmatpush1.msra.mxu0 0.0
      %1051 = vmatprep.subr.mxu0 0.0
      %1052 = vmatpush1.msra.mxu0 0.0
      %1053 = vmatprep.subr.mxu0 0.0
      %1054 = vmatpush1.msra.mxu0 0.0
      %1055 = vmatprep.subr.mxu0 0.0
      %1056 = vmatpush1.msra.mxu0 0.0
      %1057 = vmatprep.mubr.f32.mxu0 0.0
      %1058 = vmatmul.mubr.f32.gmra.mrb[0].mxu0 %v758
      %v1059 = vpop.f32.mrb[0].mxu0
      %v1060 = vadd.f32 %v542, %v1059
      %v1061 = vpop.f32.mrb[0].mxu0
      %v1062 = vadd.f32 %v542, %v1061
      %1063 = vdwg.mxu0
      %1064 = vmatprep.subr.mxu0 %v687
      %1065 = vmatpush1.msra.mxu0 %v686
      %1066 = vmatprep.subr.mxu0 %v697
      %1067 = vmatpush1.msra.mxu0 %v696
      %1068 = vmatprep.subr.mxu0 %v707
      %1069 = vmatpush1.msra.mxu0 %v706
      %1070 = vmatprep.subr.mxu0 %v711
      %1071 = vmatpush1.msra.mxu0 %v710
      %1072 = vmatprep.subr.mxu0 %v778
      %1073 = vmatpush1.msra.mxu0 %v776
      %1074 = vmatprep.subr.mxu0 0.0
      %1075 = vmatpush1.msra.mxu0 0.0
      %1076 = vmatprep.subr.mxu0 0.0
      %1077 = vmatpush1.msra.mxu0 0.0
      %1078 = vmatprep.subr.mxu0 0.0
      %1079 = vmatpush1.msra.mxu0 0.0
      %1080 = vmatprep.subr.mxu0 0.0
      %1081 = vmatpush1.msra.mxu0 0.0
      %1082 = vmatprep.subr.mxu0 0.0
      %1083 = vmatpush1.msra.mxu0 0.0
      %1084 = vmatprep.subr.mxu0 0.0
      %1085 = vmatpush1.msra.mxu0 0.0
      %1086 = vmatprep.subr.mxu0 0.0
      %1087 = vmatpush1.msra.mxu0 0.0
      %1088 = vmatprep.subr.mxu0 0.0
      %1089 = vmatpush1.msra.mxu0 0.0
      %1090 = vmatprep.subr.mxu0 0.0
      %1091 = vmatpush1.msra.mxu0 0.0
      %1092 = vmatprep.subr.mxu0 0.0
      %1093 = vmatpush1.msra.mxu0 0.0
      %1094 = vmatprep.subr.mxu0 0.0
      %1095 = vmatpush1.msra.mxu0 0.0
      %1096 = vmatprep.subr.mxu0 0.0
      %1097 = vmatpush1.msra.mxu0 0.0
      %1098 = vmatprep.subr.mxu0 0.0
      %1099 = vmatpush1.msra.mxu0 0.0
      %1100 = vmatprep.subr.mxu0 0.0
      %1101 = vmatpush1.msra.mxu0 0.0
      %1102 = vmatprep.subr.mxu0 0.0
      %1103 = vmatpush1.msra.mxu0 0.0
      %1104 = vmatprep.subr.mxu0 0.0
      %1105 = vmatpush1.msra.mxu0 0.0
      %1106 = vmatprep.subr.mxu0 0.0
      %1107 = vmatpush1.msra.mxu0 0.0
      %1108 = vmatprep.subr.mxu0 0.0
      %1109 = vmatpush1.msra.mxu0 0.0
      %1110 = vmatprep.subr.mxu0 0.0
      %1111 = vmatpush1.msra.mxu0 0.0
      %1112 = vmatprep.subr.mxu0 0.0
      %1113 = vmatpush1.msra.mxu0 0.0
      %1114 = vmatprep.subr.mxu0 0.0
      %1115 = vmatpush1.msra.mxu0 0.0
      %1116 = vmatprep.subr.mxu0 0.0
      %1117 = vmatpush1.msra.mxu0 0.0
      %1118 = vmatprep.subr.mxu0 0.0
      %1119 = vmatpush1.msra.mxu0 0.0
      %1120 = vmatprep.subr.mxu0 0.0
      %1121 = vmatpush1.msra.mxu0 0.0
      %1122 = vmatprep.subr.mxu0 0.0
      %1123 = vmatpush1.msra.mxu0 0.0
      %1124 = vmatprep.subr.mxu0 0.0
      %1125 = vmatpush1.msra.mxu0 0.0
      %1126 = vmatprep.subr.mxu0 0.0
      %1127 = vmatpush1.msra.mxu0 0.0
      %1128 = vmatprep.mubr.f32.mxu0 0.0
      %1129 = vmatmul.mubr.f32.gmra.mrb[0].mxu0 %v758
      %v1130 = vpop.f32.mrb[0].mxu0
      %v1131 = vadd.f32 %v542, %v1130
      %v1132 = vpop.f32.mrb[0].mxu0
      %v1133 = vadd.f32 %v542, %v1132
      %1134 = vdwg.mxu0
      %v1135 = vmax.f32 %v847, 0.0
      %v1136 = vmax.f32 %v849, 0.0
      %v1137 = vmax.f32 %v918, 0.0
      %v1138 = vmax.f32 %v920, 0.0
      %v1139 = vmax.f32 %v989, 0.0
      %v1140 = vmax.f32 %v991, 0.0
      %v1141 = vmax.f32 %v1060, 0.0
      %v1142 = vmax.f32 %v1062, 0.0
      %v1143 = vmax.f32 %v1131, 0.0
      %v1144 = vmax.f32 %v1133, 0.0
      %v1145 = vlaneseq
      %v1146 = vand.u32 %v1145, 127
      %v1147 = vadd.s32 %v1146, 128
      %v1148 = vadd.s32 %v1146, 256
      %v1149 = vadd.s32 %v1146, 384
      %v1150 = vadd.s32 %v1146, 512
      %v1151 = vadd.s32 %v1146, 640
      %v1152 = vadd.s32 %v1146, 768
      %v1153 = vadd.s32 %v1146, 896
      %v1154 = vadd.s32 %v1146, 1024
      %v1155 = vadd.s32 %v1146, 1152
      %s1156 = ssub.s32 1, %s229
      %s1157 = smul.u32 %s1156, 128
      %v1158 = vstv %s1157
      %vm1159 = vcmp.ge.s32.totalorder %v1146, %v1158
      %vm1160 = vcmp.ge.s32.totalorder %v1147, %v1158
      %vm1161 = vcmp.ge.s32.totalorder %v1148, %v1158
      %vm1162 = vcmp.ge.s32.totalorder %v1149, %v1158
      %vm1163 = vcmp.ge.s32.totalorder %v1150, %v1158
      %vm1164 = vcmp.ge.s32.totalorder %v1151, %v1158
      %vm1165 = vcmp.ge.s32.totalorder %v1152, %v1158
      %vm1166 = vcmp.ge.s32.totalorder %v1153, %v1158
      %vm1167 = vcmp.ge.s32.totalorder %v1154, %v1158
      %vm1168 = vcmp.ge.s32.totalorder %v1155, %v1158
      %s1169 = ssub.s32 17, %s229
      %s1170 = smul.u32 %s1169, 128
      %v1171 = vstv %s1170
      %vm1172 = vcmp.lt.s32.totalorder %v1146, %v1171
      %vm1173 = vcmp.lt.s32.totalorder %v1147, %v1171
      %vm1174 = vcmp.lt.s32.totalorder %v1148, %v1171
      %vm1175 = vcmp.lt.s32.totalorder %v1149, %v1171
      %vm1176 = vcmp.lt.s32.totalorder %v1150, %v1171
      %vm1177 = vcmp.lt.s32.totalorder %v1151, %v1171
      %vm1178 = vcmp.lt.s32.totalorder %v1152, %v1171
      %vm1179 = vcmp.lt.s32.totalorder %v1153, %v1171
      %vm1180 = vcmp.lt.s32.totalorder %v1154, %v1171
      %vm1181 = vcmp.lt.s32.totalorder %v1155, %v1171
      %vm1182 = vmand %vm1159, %vm1172
      %vm1183 = vmand %vm1160, %vm1173
      %vm1184 = vmand %vm1161, %vm1174
      %vm1185 = vmand %vm1162, %vm1175
      %vm1186 = vmand %vm1163, %vm1176
      %vm1187 = vmand %vm1164, %vm1177
      %vm1188 = vmand %vm1165, %vm1178
      %vm1189 = vmand %vm1166, %vm1179
      %vm1190 = vmand %vm1167, %vm1180
      %vm1191 = vmand %vm1168, %vm1181
      %v1192 = vld [vmem:[%s5] sm:$0xff]
      %v1193 = vld [vmem:[%s5 + $0x8] sm:$0x3]
      %v1196 = vlaneseq
      %v1197 = vshrl.u32 %v1196, 7
      %v1198 = vsub.s32 0, %v1197
      %v1199 = vrot.slane %v1192, %v1198
      %v1200 = vlaneseq
      %v1201 = vshrl.u32 %v1200, 7
      %v1202 = vsub.s32 1, %v1201
      %v1203 = vrot.slane %v1192, %v1202
      %v1204 = vlaneseq
      %v1205 = vshrl.u32 %v1204, 7
      %v1206 = vsub.s32 2, %v1205
      %v1207 = vrot.slane %v1192, %v1206
      %v1208 = vlaneseq
      %v1209 = vshrl.u32 %v1208, 7
      %v1210 = vsub.s32 3, %v1209
      %v1211 = vrot.slane %v1192, %v1210
      %v1212 = vlaneseq
      %v1213 = vshrl.u32 %v1212, 7
      %v1214 = vsub.s32 4, %v1213
      %v1215 = vrot.slane %v1192, %v1214
      %v1216 = vlaneseq
      %v1217 = vshrl.u32 %v1216, 7
      %v1218 = vsub.s32 5, %v1217
      %v1219 = vrot.slane %v1192, %v1218
      %v1220 = vlaneseq
      %v1221 = vshrl.u32 %v1220, 7
      %v1222 = vsub.s32 6, %v1221
      %v1223 = vrot.slane %v1192, %v1222
      %v1224 = vlaneseq
      %v1225 = vshrl.u32 %v1224, 7
      %v1226 = vsub.s32 7, %v1225
      %v1227 = vrot.slane %v1192, %v1226
      %v1228 = vlaneseq
      %v1229 = vshrl.u32 %v1228, 7
      %v1230 = vsub.s32 0, %v1229
      %v1231 = vrot.slane %v1193, %v1230
      %v1232 = vlaneseq
      %v1233 = vshrl.u32 %v1232, 7
      %v1234 = vsub.s32 1, %v1233
      %v1235 = vrot.slane %v1193, %v1234
      %v1246 = vmul.f32 %v1135, %v1199
      %v1247 = vmul.f32 %v1136, %v1203
      %v1248 = vmul.f32 %v1137, %v1207
      %v1249 = vmul.f32 %v1138, %v1211
      %v1250 = vmul.f32 %v1139, %v1215
      %v1251 = vmul.f32 %v1140, %v1219
      %v1252 = vmul.f32 %v1141, %v1223
      %v1253 = vmul.f32 %v1142, %v1227
      %v1254 = vmul.f32 %v1143, %v1231
      %v1255 = vmul.f32 %v1144, %v1235
      %v1256 = vsel %vm1182, 1, 0
      %v1257 = vsel %vm1183, 1, 0
      %v1258 = vsel %vm1184, 1, 0
      %v1259 = vsel %vm1185, 1, 0
      %v1260 = vsel %vm1186, 1, 0
      %v1261 = vsel %vm1187, 1, 0
      %v1262 = vsel %vm1188, 1, 0
      %v1263 = vsel %vm1189, 1, 0
      %v1264 = vsel %vm1190, 1, 0
      %v1265 = vsel %vm1191, 1, 0
      %v1266 = vcvt.s32.f32 %v1256
      %v1267 = vcvt.s32.f32 %v1257
      %v1268 = vcvt.s32.f32 %v1258
      %v1269 = vcvt.s32.f32 %v1259
      %v1270 = vcvt.s32.f32 %v1260
      %v1271 = vcvt.s32.f32 %v1261
      %v1272 = vcvt.s32.f32 %v1262
      %v1273 = vcvt.s32.f32 %v1263
      %v1274 = vcvt.s32.f32 %v1264
      %v1275 = vcvt.s32.f32 %v1265
      %v1276 = vmul.f32 %v1246, %v1266
      %v1277 = vmul.f32 %v1247, %v1267
      %v1278 = vmul.f32 %v1248, %v1268
      %v1279 = vmul.f32 %v1249, %v1269
      %v1280 = vmul.f32 %v1250, %v1270
      %v1281 = vmul.f32 %v1251, %v1271
      %v1282 = vmul.f32 %v1252, %v1272
      %v1283 = vmul.f32 %v1253, %v1273
      %v1284 = vmul.f32 %v1254, %v1274
      %v1285 = vmul.f32 %v1255, %v1275
      %v1296 = vcombine.low %v1276, %v1277
      %v1297 = vcombine.low %v1278, %v1279
      %v1298 = vcombine.low %v1280, %v1281
      %v1299 = vcombine.low %v1282, %v1283
      %v1300 = vcombine.low %v1284, %v1285
      %1306 = vst [vmem:[#allocation3 + $0x4] sm:$0xff] %v1296
      %1307 = vst [vmem:[#allocation3 + $0xc] sm:$0xff] %v1297
      %1308 = vst [vmem:[#allocation3 + $0x14] sm:$0xff] %v1298
      %1309 = vst [vmem:[#allocation3 + $0x1c] sm:$0xff] %v1299
      %1310 = vst [vmem:[#allocation3 + $0x24] sm:$0xff] %v1300
      %v1311 = vld [vmem:[#allocation3] sm:$0xff]
      %v1312 = vld [vmem:[#allocation3 + $0x8] sm:$0xff]
      %v1313 = vld [vmem:[#allocation3 + $0x10] sm:$0xff]
      %v1314 = vld [vmem:[#allocation3 + $0x18] sm:$0xff]
      %v1315 = vld [vmem:[#allocation3 + $0x20] sm:$0xff]
      %v1316 = vld [vmem:[#allocation3 + $0x28] sm:$0xff]
      %v1322 = vcombine.high %v1311, %v1311
      %v1323 = vcombine.high %v1312, %v1312
      %v1324 = vcombine.high %v1313, %v1313
      %v1325 = vcombine.high %v1314, %v1314
      %v1330 = vcombine.low %v1312, %v1312
      %v1331 = vcombine.low %v1313, %v1313
      %v1332 = vcombine.low %v1314, %v1314
      %v1333 = vcombine.low %v1315, %v1315
      %1334 = vrot.lane.b32.xlu0 %v1311, 127
      %v1335 = vpop.permute.xlu0 %1334
      %1336 = vrot.lane.b32.xlu0 %v1330, 127
      %v1337 = vpop.permute.xlu0 %1336
      %1338 = vrot.lane.b32.xlu0 %v1312, 127
      %v1339 = vpop.permute.xlu0 %1338
      %1340 = vrot.lane.b32.xlu0 %v1331, 127
      %v1341 = vpop.permute.xlu0 %1340
      %1342 = vrot.lane.b32.xlu0 %v1313, 127
      %v1343 = vpop.permute.xlu0 %1342
      %1344 = vrot.lane.b32.xlu0 %v1332, 127
      %v1345 = vpop.permute.xlu0 %1344
      %1346 = vrot.lane.b32.xlu0 %v1314, 127
      %v1347 = vpop.permute.xlu0 %1346
      %1348 = vrot.lane.b32.xlu0 %v1333, 127
      %v1349 = vpop.permute.xlu0 %1348
      %v1350 = vsel %vm346, %v1335, %v1337
      %v1351 = vsel %vm346, %v1337, %v1339
      %v1352 = vsel %vm346, %v1339, %v1341
      %v1353 = vsel %vm346, %v1341, %v1343
      %v1354 = vsel %vm346, %v1343, %v1345
      %v1355 = vsel %vm346, %v1345, %v1347
      %v1356 = vsel %vm346, %v1347, %v1349
      %v1366 = vcombine.high %v1315, %v1315
      %1367 = vrot.lane.b32.xlu0 %v1322, 126
      %v1368 = vpop.permute.xlu0 %1367
      %1369 = vrot.lane.b32.xlu0 %v1312, 126
      %v1370 = vpop.permute.xlu0 %1369
      %1371 = vrot.lane.b32.xlu0 %v1323, 126
      %v1372 = vpop.permute.xlu0 %1371
      %1373 = vrot.lane.b32.xlu0 %v1313, 126
      %v1374 = vpop.permute.xlu0 %1373
      %1375 = vrot.lane.b32.xlu0 %v1324, 126
      %v1376 = vpop.permute.xlu0 %1375
      %1377 = vrot.lane.b32.xlu0 %v1314, 126
      %v1378 = vpop.permute.xlu0 %1377
      %1379 = vrot.lane.b32.xlu0 %v1325, 126
      %v1380 = vpop.permute.xlu0 %1379
      %1381 = vrot.lane.b32.xlu0 %v1315, 126
      %v1382 = vpop.permute.xlu0 %1381
      %1383 = vrot.lane.b32.xlu0 %v1366, 126
      %v1384 = vpop.permute.xlu0 %1383
      %v1385 = vsel %vm390, %v1368, %v1370
      %v1386 = vsel %vm390, %v1370, %v1372
      %v1387 = vsel %vm390, %v1372, %v1374
      %v1388 = vsel %vm390, %v1374, %v1376
      %v1389 = vsel %vm390, %v1376, %v1378
      %v1390 = vsel %vm390, %v1378, %v1380
      %v1391 = vsel %vm390, %v1380, %v1382
      %v1392 = vsel %vm390, %v1382, %v1384
      %1406 = vrot.lane.b32.xlu0 %v1323, 127
      %v1407 = vpop.permute.xlu0 %1406
      %1408 = vrot.lane.b32.xlu0 %v1324, 127
      %v1409 = vpop.permute.xlu0 %1408
      %1410 = vrot.lane.b32.xlu0 %v1325, 127
      %v1411 = vpop.permute.xlu0 %1410
      %1412 = vrot.lane.b32.xlu0 %v1315, 127
      %v1413 = vpop.permute.xlu0 %1412
      %1414 = vrot.lane.b32.xlu0 %v1366, 127
      %v1415 = vpop.permute.xlu0 %1414
      %v1416 = vsel %vm346, %v1339, %v1407
      %v1417 = vsel %vm346, %v1407, %v1343
      %v1418 = vsel %vm346, %v1343, %v1409
      %v1419 = vsel %vm346, %v1409, %v1347
      %v1420 = vsel %vm346, %v1347, %v1411
      %v1421 = vsel %vm346, %v1411, %v1413
      %v1422 = vsel %vm346, %v1413, %v1415
      %v1433 = vcombine.low %v1316, %v1316
      %1434 = vrot.lane.b32.xlu0 %v1330, 126
      %v1435 = vpop.permute.xlu0 %1434
      %1436 = vrot.lane.b32.xlu0 %v1331, 126
      %v1437 = vpop.permute.xlu0 %1436
      %1438 = vrot.lane.b32.xlu0 %v1332, 126
      %v1439 = vpop.permute.xlu0 %1438
      %1440 = vrot.lane.b32.xlu0 %v1333, 126
      %v1441 = vpop.permute.xlu0 %1440
      %1442 = vrot.lane.b32.xlu0 %v1433, 126
      %v1443 = vpop.permute.xlu0 %1442
      %v1444 = vsel %vm390, %v1435, %v1370
      %v1445 = vsel %vm390, %v1370, %v1437
      %v1446 = vsel %vm390, %v1437, %v1374
      %v1447 = vsel %vm390, %v1374, %v1439
      %v1448 = vsel %vm390, %v1439, %v1378
      %v1449 = vsel %vm390, %v1378, %v1441
      %v1450 = vsel %vm390, %v1441, %v1382
      %v1451 = vsel %vm390, %v1382, %v1443
      %1462 = vrot.lane.b32.xlu0 %v1433, 127
      %v1463 = vpop.permute.xlu0 %1462
      %v1464 = vsel %vm346, %v1349, %v1413
      %v1465 = vsel %vm346, %v1413, %v1463
      %v1469 = vcombine.high %v1316, %v1316
      %1470 = vrot.lane.b32.xlu0 %v1316, 126
      %v1471 = vpop.permute.xlu0 %1470
      %1472 = vrot.lane.b32.xlu0 %v1469, 126
      %v1473 = vpop.permute.xlu0 %1472
      %v1474 = vsel %vm390, %v1384, %v1471
      %v1475 = vsel %vm390, %v1471, %v1473
      %v1476 = vsel %vm499, %v1311, %v1335
      %v1477 = vsel %vm499, %v1322, %v1350
      %v1478 = vsel %vm499, %v1312, %v1351
      %v1479 = vsel %vm499, %v1323, %v1352
      %v1480 = vsel %vm499, %v1313, %v1353
      %v1481 = vsel %vm499, %v1324, %v1354
      %v1482 = vsel %vm499, %v1314, %v1355
      %v1483 = vsel %vm499, %v1325, %v1356
      %v1484 = vsel %vm499, %v1315, %v1349
      %v1485 = vsel %vm499, %v1368, %v1311
      %v1486 = vsel %vm499, %v1385, %v1330
      %v1487 = vsel %vm499, %v1386, %v1312
      %v1488 = vsel %vm499, %v1387, %v1331
      %v1489 = vsel %vm499, %v1388, %v1313
      %v1490 = vsel %vm499, %v1389, %v1332
      %v1491 = vsel %vm499, %v1390, %v1314
      %v1492 = vsel %vm499, %v1391, %v1333
      %v1493 = vsel %vm499, %v1392, %v1315
      %v1494 = vsel %vm499, %v1339, %v1435
      %v1495 = vsel %vm499, %v1416, %v1444
      %v1496 = vsel %vm499, %v1417, %v1445
      %v1497 = vsel %vm499, %v1418, %v1446
      %v1498 = vsel %vm499, %v1419, %v1447
      %v1499 = vsel %vm499, %v1420, %v1448
      %v1500 = vsel %vm499, %v1421, %v1449
      %v1501 = vsel %vm499, %v1422, %v1450
      %v1502 = vsel %vm499, %v1415, %v1451
      %v1503 = vsel %vm499, %v1312, %v1339
      %v1504 = vsel %vm499, %v1315, %v1464
      %v1505 = vsel %vm499, %v1366, %v1465
      %v1506 = vsel %vm499, %v1316, %v1463
      %v1507 = vld [vmem:[%s3] sm:$0xf]
      %v1508 = vld [vmem:[%s4] sm:$0xf]
      %1510 = vset.pattern.permute.xlu0 0
      %1511 = vperm.xlu0 %1510, %v1508
      %v1512 = vpop.permute.xlu0 %1511
      %1545 = vrot.lane.b32.xlu0 %v1476, 1
      %v1546 = vpop.permute.xlu0 %1545
      %1547 = vrot.lane.b32.xlu0 %v1477, 1
      %v1548 = vpop.permute.xlu0 %1547
      %1549 = vrot.lane.b32.xlu0 %v1478, 1
      %v1550 = vpop.permute.xlu0 %1549
      %1551 = vrot.lane.b32.xlu0 %v1479, 1
      %v1552 = vpop.permute.xlu0 %1551
      %1553 = vrot.lane.b32.xlu0 %v1480, 1
      %v1554 = vpop.permute.xlu0 %1553
      %1555 = vrot.lane.b32.xlu0 %v1481, 1
      %v1556 = vpop.permute.xlu0 %1555
      %1557 = vrot.lane.b32.xlu0 %v1482, 1
      %v1558 = vpop.permute.xlu0 %1557
      %1559 = vrot.lane.b32.xlu0 %v1483, 1
      %v1560 = vpop.permute.xlu0 %1559
      %1561 = vrot.lane.b32.xlu0 %v1484, 1
      %v1562 = vpop.permute.xlu0 %1561
      %1563 = vrot.lane.b32.xlu0 %v1485, 1
      %v1564 = vpop.permute.xlu0 %1563
      %1565 = vrot.lane.b32.xlu0 %v1486, 1
      %v1566 = vpop.permute.xlu0 %1565
      %1567 = vrot.lane.b32.xlu0 %v1487, 1
      %v1568 = vpop.permute.xlu0 %1567
      %1569 = vrot.lane.b32.xlu0 %v1488, 1
      %v1570 = vpop.permute.xlu0 %1569
      %1571 = vrot.lane.b32.xlu0 %v1489, 1
      %v1572 = vpop.permute.xlu0 %1571
      %1573 = vrot.lane.b32.xlu0 %v1490, 1
      %v1574 = vpop.permute.xlu0 %1573
      %1575 = vrot.lane.b32.xlu0 %v1491, 1
      %v1576 = vpop.permute.xlu0 %1575
      %1577 = vrot.lane.b32.xlu0 %v1492, 1
      %v1578 = vpop.permute.xlu0 %1577
      %1579 = vrot.lane.b32.xlu0 %v1493, 1
      %v1580 = vpop.permute.xlu0 %1579
      %1581 = vrot.lane.b32.xlu0 %v1494, 1
      %v1582 = vpop.permute.xlu0 %1581
      %1583 = vrot.lane.b32.xlu0 %v1495, 1
      %v1584 = vpop.permute.xlu0 %1583
      %1585 = vrot.lane.b32.xlu0 %v1496, 1
      %v1586 = vpop.permute.xlu0 %1585
      %1587 = vrot.lane.b32.xlu0 %v1497, 1
      %v1588 = vpop.permute.xlu0 %1587
      %1589 = vrot.lane.b32.xlu0 %v1498, 1
      %v1590 = vpop.permute.xlu0 %1589
      %1591 = vrot.lane.b32.xlu0 %v1499, 1
      %v1592 = vpop.permute.xlu0 %1591
      %1593 = vrot.lane.b32.xlu0 %v1500, 1
      %v1594 = vpop.permute.xlu0 %1593
      %1595 = vrot.lane.b32.xlu0 %v1501, 1
      %v1596 = vpop.permute.xlu0 %1595
      %1597 = vrot.lane.b32.xlu0 %v1502, 1
      %v1598 = vpop.permute.xlu0 %1597
      %1599 = vrot.lane.b32.xlu0 %v1503, 1
      %v1600 = vpop.permute.xlu0 %1599
      %1601 = vrot.lane.b32.xlu0 %v1504, 1
      %v1602 = vpop.permute.xlu0 %1601
      %1603 = vrot.lane.b32.xlu0 %v1505, 1
      %v1604 = vpop.permute.xlu0 %1603
      %1605 = vrot.lane.b32.xlu0 %v1506, 1
      %v1606 = vpop.permute.xlu0 %1605
      %1607 = vrot.lane.b32.xlu0 %v1372, 1
      %v1608 = vpop.permute.xlu0 %1607
      %1609 = vrot.lane.b32.xlu0 %v1387, 1
      %v1610 = vpop.permute.xlu0 %1609
      %1611 = vrot.lane.b32.xlu0 %v1388, 1
      %v1612 = vpop.permute.xlu0 %1611
      %1613 = vrot.lane.b32.xlu0 %v1389, 1
      %v1614 = vpop.permute.xlu0 %1613
      %1615 = vrot.lane.b32.xlu0 %v1390, 1
      %v1616 = vpop.permute.xlu0 %1615
      %1617 = vrot.lane.b32.xlu0 %v1391, 1
      %v1618 = vpop.permute.xlu0 %1617
      %1619 = vrot.lane.b32.xlu0 %v1392, 1
      %v1620 = vpop.permute.xlu0 %1619
      %1621 = vrot.lane.b32.xlu0 %v1474, 1
      %v1622 = vpop.permute.xlu0 %1621
      %1623 = vrot.lane.b32.xlu0 %v1475, 1
      %v1624 = vpop.permute.xlu0 %1623
      %v1625 = vsel %vm677, %v1546, %v1548
      %v1626 = vsel %vm677, %v1548, %v1550
      %v1627 = vsel %vm677, %v1550, %v1552
      %v1628 = vsel %vm677, %v1552, %v1554
      %v1629 = vsel %vm677, %v1554, %v1556
      %v1630 = vsel %vm677, %v1556, %v1558
      %v1631 = vsel %vm677, %v1558, %v1560
      %v1632 = vsel %vm677, %v1560, %v1562
      %v1633 = vsel %vm677, %v1564, %v1566
      %v1634 = vsel %vm677, %v1566, %v1568
      %v1635 = vsel %vm677, %v1568, %v1570
      %v1636 = vsel %vm677, %v1570, %v1572
      %v1637 = vsel %vm677, %v1572, %v1574
      %v1638 = vsel %vm677, %v1574, %v1576
      %v1639 = vsel %vm677, %v1576, %v1578
      %v1640 = vsel %vm677, %v1578, %v1580
      %v1641 = vsel %vm677, %v1582, %v1584
      %v1642 = vsel %vm677, %v1584, %v1586
      %v1643 = vsel %vm677, %v1586, %v1588
      %v1644 = vsel %vm677, %v1588, %v1590
      %v1645 = vsel %vm677, %v1590, %v1592
      %v1646 = vsel %vm677, %v1592, %v1594
      %v1647 = vsel %vm677, %v1594, %v1596
      %v1648 = vsel %vm677, %v1596, %v1598
      %v1649 = vsel %vm677, %v1600, %v1552
      %v1650 = vsel %vm677, %v1560, %v1602
      %v1651 = vsel %vm677, %v1602, %v1604
      %v1652 = vsel %vm677, %v1604, %v1606
      %v1653 = vsel %vm677, %v1608, %v1610
      %v1654 = vsel %vm677, %v1610, %v1612
      %v1655 = vsel %vm677, %v1612, %v1614
      %v1656 = vsel %vm677, %v1614, %v1616
      %v1657 = vsel %vm677, %v1616, %v1618
      %v1658 = vsel %vm677, %v1618, %v1620
      %v1659 = vsel %vm677, %v1620, %v1622
      %v1660 = vsel %vm677, %v1622, %v1624
      %v1690 = vsel %vm756, %v1507, 0
      %v1692 = vsel %vm499, %v1653, 0
      %v1694 = vsel %vm499, %v1654, 0
      %v1696 = vsel %vm499, %v1655, 0
      %v1698 = vsel %vm499, %v1656, 0
      %v1700 = vsel %vm499, %v1657, 0
      %v1702 = vsel %vm499, %v1658, 0
      %v1704 = vsel %vm499, %v1659, 0
      %v1706 = vsel %vm499, %v1660, 0
      %1708 = vmatprep.subr.mxu0 %v1626
      %1709 = vmatpush1.msra.mxu0 %v1625
      %1710 = vmatprep.subr.mxu0 %v1634
      %1711 = vmatpush1.msra.mxu0 %v1633
      %1712 = vmatprep.subr.mxu0 %v1642
      %1713 = vmatpush1.msra.mxu0 %v1641
      %1714 = vmatprep.subr.mxu0 %v1628
      %1715 = vmatpush1.msra.mxu0 %v1649
      %1716 = vmatprep.subr.mxu0 %v1694
      %1717 = vmatpush1.msra.mxu0 %v1692
      %1718 = vmatprep.subr.mxu0 0.0
      %1719 = vmatpush1.msra.mxu0 0.0
      %1720 = vmatprep.subr.mxu0 0.0
      %1721 = vmatpush1.msra.mxu0 0.0
      %1722 = vmatprep.subr.mxu0 0.0
      %1723 = vmatpush1.msra.mxu0 0.0
      %1724 = vmatprep.subr.mxu0 0.0
      %1725 = vmatpush1.msra.mxu0 0.0
      %1726 = vmatprep.subr.mxu0 0.0
      %1727 = vmatpush1.msra.mxu0 0.0
      %1728 = vmatprep.subr.mxu0 0.0
      %1729 = vmatpush1.msra.mxu0 0.0
      %1730 = vmatprep.subr.mxu0 0.0
      %1731 = vmatpush1.msra.mxu0 0.0
      %1732 = vmatprep.subr.mxu0 0.0
      %1733 = vmatpush1.msra.mxu0 0.0
      %1734 = vmatprep.subr.mxu0 0.0
      %1735 = vmatpush1.msra.mxu0 0.0
      %1736 = vmatprep.subr.mxu0 0.0
      %1737 = vmatpush1.msra.mxu0 0.0
      %1738 = vmatprep.subr.mxu0 0.0
      %1739 = vmatpush1.msra.mxu0 0.0
      %1740 = vmatprep.subr.mxu0 0.0
      %1741 = vmatpush1.msra.mxu0 0.0
      %1742 = vmatprep.subr.mxu0 0.0
      %1743 = vmatpush1.msra.mxu0 0.0
      %1744 = vmatprep.subr.mxu0 0.0
      %1745 = vmatpush1.msra.mxu0 0.0
      %1746 = vmatprep.subr.mxu0 0.0
      %1747 = vmatpush1.msra.mxu0 0.0
      %1748 = vmatprep.subr.mxu0 0.0
      %1749 = vmatpush1.msra.mxu0 0.0
      %1750 = vmatprep.subr.mxu0 0.0
      %1751 = vmatpush1.msra.mxu0 0.0
      %1752 = vmatprep.subr.mxu0 0.0
      %1753 = vmatpush1.msra.mxu0 0.0
      %1754 = vmatprep.subr.mxu0 0.0
      %1755 = vmatpush1.msra.mxu0 0.0
      %1756 = vmatprep.subr.mxu0 0.0
      %1757 = vmatpush1.msra.mxu0 0.0
      %1758 = vmatprep.subr.mxu0 0.0
      %1759 = vmatpush1.msra.mxu0 0.0
      %1760 = vmatprep.subr.mxu0 0.0
      %1761 = vmatpush1.msra.mxu0 0.0
      %1762 = vmatprep.subr.mxu0 0.0
      %1763 = vmatpush1.msra.mxu0 0.0
      %1764 = vmatprep.subr.mxu0 0.0
      %1765 = vmatpush1.msra.mxu0 0.0
      %1766 = vmatprep.subr.mxu0 0.0
      %1767 = vmatpush1.msra.mxu0 0.0
      %1768 = vmatprep.subr.mxu0 0.0
      %1769 = vmatpush1.msra.mxu0 0.0
      %1770 = vmatprep.subr.mxu0 0.0
      %1771 = vmatpush1.msra.mxu0 0.0
      %1772 = vmatprep.mubr.f32.mxu0 0.0
      %1773 = vmatmul.mubr.f32.gmra.mrb[0].mxu0 %v1690
      %v1774 = vpop.f32.mrb[0].mxu0
      %v1775 = vadd.f32 %v1512, %v1774
      %v1776 = vpop.f32.mrb[0].mxu0
      %v1777 = vadd.f32 %v1512, %v1776
      %1778 = vdwg.mxu0
      %1779 = vmatprep.subr.mxu0 %v1628
      %1780 = vmatpush1.msra.mxu0 %v1627
      %1781 = vmatprep.subr.mxu0 %v1636
      %1782 = vmatpush1.msra.mxu0 %v1635
      %1783 = vmatprep.subr.mxu0 %v1644
      %1784 = vmatpush1.msra.mxu0 %v1643
      %1785 = vmatprep.subr.mxu0 %v1630
      %1786 = vmatpush1.msra.mxu0 %v1629
      %1787 = vmatprep.subr.mxu0 %v1698
      %1788 = vmatpush1.msra.mxu0 %v1696
      %1789 = vmatprep.subr.mxu0 0.0
      %1790 = vmatpush1.msra.mxu0 0.0
      %1791 = vmatprep.subr.mxu0 0.0
      %1792 = vmatpush1.msra.mxu0 0.0
      %1793 = vmatprep.subr.mxu0 0.0
      %1794 = vmatpush1.msra.mxu0 0.0
      %1795 = vmatprep.subr.mxu0 0.0
      %1796 = vmatpush1.msra.mxu0 0.0
      %1797 = vmatprep.subr.mxu0 0.0
      %1798 = vmatpush1.msra.mxu0 0.0
      %1799 = vmatprep.subr.mxu0 0.0
      %1800 = vmatpush1.msra.mxu0 0.0
      %1801 = vmatprep.subr.mxu0 0.0
      %1802 = vmatpush1.msra.mxu0 0.0
      %1803 = vmatprep.subr.mxu0 0.0
      %1804 = vmatpush1.msra.mxu0 0.0
      %1805 = vmatprep.subr.mxu0 0.0
      %1806 = vmatpush1.msra.mxu0 0.0
      %1807 = vmatprep.subr.mxu0 0.0
      %1808 = vmatpush1.msra.mxu0 0.0
      %1809 = vmatprep.subr.mxu0 0.0
      %1810 = vmatpush1.msra.mxu0 0.0
      %1811 = vmatprep.subr.mxu0 0.0
      %1812 = vmatpush1.msra.mxu0 0.0
      %1813 = vmatprep.subr.mxu0 0.0
      %1814 = vmatpush1.msra.mxu0 0.0
      %1815 = vmatprep.subr.mxu0 0.0
      %1816 = vmatpush1.msra.mxu0 0.0
      %1817 = vmatprep.subr.mxu0 0.0
      %1818 = vmatpush1.msra.mxu0 0.0
      %1819 = vmatprep.subr.mxu0 0.0
      %1820 = vmatpush1.msra.mxu0 0.0
      %1821 = vmatprep.subr.mxu0 0.0
      %1822 = vmatpush1.msra.mxu0 0.0
      %1823 = vmatprep.subr.mxu0 0.0
      %1824 = vmatpush1.msra.mxu0 0.0
      %1825 = vmatprep.subr.mxu0 0.0
      %1826 = vmatpush1.msra.mxu0 0.0
      %1827 = vmatprep.subr.mxu0 0.0
      %1828 = vmatpush1.msra.mxu0 0.0
      %1829 = vmatprep.subr.mxu0 0.0
      %1830 = vmatpush1.msra.mxu0 0.0
      %1831 = vmatprep.subr.mxu0 0.0
      %1832 = vmatpush1.msra.mxu0 0.0
      %1833 = vmatprep.subr.mxu0 0.0
      %1834 = vmatpush1.msra.mxu0 0.0
      %1835 = vmatprep.subr.mxu0 0.0
      %1836 = vmatpush1.msra.mxu0 0.0
      %1837 = vmatprep.subr.mxu0 0.0
      %1838 = vmatpush1.msra.mxu0 0.0
      %1839 = vmatprep.subr.mxu0 0.0
      %1840 = vmatpush1.msra.mxu0 0.0
      %1841 = vmatprep.subr.mxu0 0.0
      %1842 = vmatpush1.msra.mxu0 0.0
      %1843 = vmatprep.mubr.f32.mxu0 0.0
      %1844 = vmatmul.mubr.f32.gmra.mrb[0].mxu0 %v1690
      %v1845 = vpop.f32.mrb[0].mxu0
      %v1846 = vadd.f32 %v1512, %v1845
      %v1847 = vpop.f32.mrb[0].mxu0
      %v1848 = vadd.f32 %v1512, %v1847
      %1849 = vdwg.mxu0
      %1850 = vmatprep.subr.mxu0 %v1630
      %1851 = vmatpush1.msra.mxu0 %v1629
      %1852 = vmatprep.subr.mxu0 %v1638
      %1853 = vmatpush1.msra.mxu0 %v1637
      %1854 = vmatprep.subr.mxu0 %v1646
      %1855 = vmatpush1.msra.mxu0 %v1645
      %1856 = vmatprep.subr.mxu0 %v1650
      %1857 = vmatpush1.msra.mxu0 %v1631
      %1858 = vmatprep.subr.mxu0 %v1702
      %1859 = vmatpush1.msra.mxu0 %v1700
      %1860 = vmatprep.subr.mxu0 0.0
      %1861 = vmatpush1.msra.mxu0 0.0
      %1862 = vmatprep.subr.mxu0 0.0
      %1863 = vmatpush1.msra.mxu0 0.0
      %1864 = vmatprep.subr.mxu0 0.0
      %1865 = vmatpush1.msra.mxu0 0.0
      %1866 = vmatprep.subr.mxu0 0.0
      %1867 = vmatpush1.msra.mxu0 0.0
      %1868 = vmatprep.subr.mxu0 0.0
      %1869 = vmatpush1.msra.mxu0 0.0
      %1870 = vmatprep.subr.mxu0 0.0
      %1871 = vmatpush1.msra.mxu0 0.0
      %1872 = vmatprep.subr.mxu0 0.0
      %1873 = vmatpush1.msra.mxu0 0.0
      %1874 = vmatprep.subr.mxu0 0.0
      %1875 = vmatpush1.msra.mxu0 0.0
      %1876 = vmatprep.subr.mxu0 0.0
      %1877 = vmatpush1.msra.mxu0 0.0
      %1878 = vmatprep.subr.mxu0 0.0
      %1879 = vmatpush1.msra.mxu0 0.0
      %1880 = vmatprep.subr.mxu0 0.0
      %1881 = vmatpush1.msra.mxu0 0.0
      %1882 = vmatprep.subr.mxu0 0.0
      %1883 = vmatpush1.msra.mxu0 0.0
      %1884 = vmatprep.subr.mxu0 0.0
      %1885 = vmatpush1.msra.mxu0 0.0
      %1886 = vmatprep.subr.mxu0 0.0
      %1887 = vmatpush1.msra.mxu0 0.0
      %1888 = vmatprep.subr.mxu0 0.0
      %1889 = vmatpush1.msra.mxu0 0.0
      %1890 = vmatprep.subr.mxu0 0.0
      %1891 = vmatpush1.msra.mxu0 0.0
      %1892 = vmatprep.subr.mxu0 0.0
      %1893 = vmatpush1.msra.mxu0 0.0
      %1894 = vmatprep.subr.mxu0 0.0
      %1895 = vmatpush1.msra.mxu0 0.0
      %1896 = vmatprep.subr.mxu0 0.0
      %1897 = vmatpush1.msra.mxu0 0.0
      %1898 = vmatprep.subr.mxu0 0.0
      %1899 = vmatpush1.msra.mxu0 0.0
      %1900 = vmatprep.subr.mxu0 0.0
      %1901 = vmatpush1.msra.mxu0 0.0
      %1902 = vmatprep.subr.mxu0 0.0
      %1903 = vmatpush1.msra.mxu0 0.0
      %1904 = vmatprep.subr.mxu0 0.0
      %1905 = vmatpush1.msra.mxu0 0.0
      %1906 = vmatprep.subr.mxu0 0.0
      %1907 = vmatpush1.msra.mxu0 0.0
      %1908 = vmatprep.subr.mxu0 0.0
      %1909 = vmatpush1.msra.mxu0 0.0
      %1910 = vmatprep.subr.mxu0 0.0
      %1911 = vmatpush1.msra.mxu0 0.0
      %1912 = vmatprep.subr.mxu0 0.0
      %1913 = vmatpush1.msra.mxu0 0.0
      %1914 = vmatprep.mubr.f32.mxu0 0.0
      %1915 = vmatmul.mubr.f32.gmra.mrb[0].mxu0 %v1690
      %v1916 = vpop.f32.mrb[0].mxu0
      %v1917 = vadd.f32 %v1512, %v1916
      %v1918 = vpop.f32.mrb[0].mxu0
      %v1919 = vadd.f32 %v1512, %v1918
      %1920 = vdwg.mxu0
      %1921 = vmatprep.subr.mxu0 %v1632
      %1922 = vmatpush1.msra.mxu0 %v1631
      %1923 = vmatprep.subr.mxu0 %v1640
      %1924 = vmatpush1.msra.mxu0 %v1639
      %1925 = vmatprep.subr.mxu0 %v1648
      %1926 = vmatpush1.msra.mxu0 %v1647
      %1927 = vmatprep.subr.mxu0 %v1652
      %1928 = vmatpush1.msra.mxu0 %v1651
      %1929 = vmatprep.subr.mxu0 %v1706
      %1930 = vmatpush1.msra.mxu0 %v1704
      %1931 = vmatprep.subr.mxu0 0.0
      %1932 = vmatpush1.msra.mxu0 0.0
      %1933 = vmatprep.subr.mxu0 0.0
      %1934 = vmatpush1.msra.mxu0 0.0
      %1935 = vmatprep.subr.mxu0 0.0
      %1936 = vmatpush1.msra.mxu0 0.0
      %1937 = vmatprep.subr.mxu0 0.0
      %1938 = vmatpush1.msra.mxu0 0.0
      %1939 = vmatprep.subr.mxu0 0.0
      %1940 = vmatpush1.msra.mxu0 0.0
      %1941 = vmatprep.subr.mxu0 0.0
      %1942 = vmatpush1.msra.mxu0 0.0
      %1943 = vmatprep.subr.mxu0 0.0
      %1944 = vmatpush1.msra.mxu0 0.0
      %1945 = vmatprep.subr.mxu0 0.0
      %1946 = vmatpush1.msra.mxu0 0.0
      %1947 = vmatprep.subr.mxu0 0.0
      %1948 = vmatpush1.msra.mxu0 0.0
      %1949 = vmatprep.subr.mxu0 0.0
      %1950 = vmatpush1.msra.mxu0 0.0
      %1951 = vmatprep.subr.mxu0 0.0
      %1952 = vmatpush1.msra.mxu0 0.0
      %1953 = vmatprep.subr.mxu0 0.0
      %1954 = vmatpush1.msra.mxu0 0.0
      %1955 = vmatprep.subr.mxu0 0.0
      %1956 = vmatpush1.msra.mxu0 0.0
      %1957 = vmatprep.subr.mxu0 0.0
      %1958 = vmatpush1.msra.mxu0 0.0
      %1959 = vmatprep.subr.mxu0 0.0
      %1960 = vmatpush1.msra.mxu0 0.0
      %1961 = vmatprep.subr.mxu0 0.0
      %1962 = vmatpush1.msra.mxu0 0.0
      %1963 = vmatprep.subr.mxu0 0.0
      %1964 = vmatpush1.msra.mxu0 0.0
      %1965 = vmatprep.subr.mxu0 0.0
      %1966 = vmatpush1.msra.mxu0 0.0
      %1967 = vmatprep.subr.mxu0 0.0
      %1968 = vmatpush1.msra.mxu0 0.0
      %1969 = vmatprep.subr.mxu0 0.0
      %1970 = vmatpush1.msra.mxu0 0.0
      %1971 = vmatprep.subr.mxu0 0.0
      %1972 = vmatpush1.msra.mxu0 0.0
      %1973 = vmatprep.subr.mxu0 0.0
      %1974 = vmatpush1.msra.mxu0 0.0
      %1975 = vmatprep.subr.mxu0 0.0
      %1976 = vmatpush1.msra.mxu0 0.0
      %1977 = vmatprep.subr.mxu0 0.0
      %1978 = vmatpush1.msra.mxu0 0.0
      %1979 = vmatprep.subr.mxu0 0.0
      %1980 = vmatpush1.msra.mxu0 0.0
      %1981 = vmatprep.subr.mxu0 0.0
      %1982 = vmatpush1.msra.mxu0 0.0
      %1983 = vmatprep.subr.mxu0 0.0
      %1984 = vmatpush1.msra.mxu0 0.0
      %1985 = vmatprep.mubr.f32.mxu0 0.0
      %1986 = vmatmul.mubr.f32.gmra.mrb[0].mxu0 %v1690
      %v1987 = vpop.f32.mrb[0].mxu0
      %v1988 = vadd.f32 %v1512, %v1987
      %v1989 = vpop.f32.mrb[0].mxu0
      %v1990 = vadd.f32 %v1512, %v1989
      %1991 = vdwg.mxu0
      %v2000 = vcombine.low %v1775, %v1777
      %v2001 = vcombine.low %v1846, %v1848
      %v2002 = vcombine.low %v1917, %v1919
      %v2003 = vcombine.low %v1988, %v1990
      %2008 = vst [vmem:[%s227] sm:$0xff] %v2000
      %2009 = vst [vmem:[%s227 + $0x8] sm:$0xff] %v2001
      %2010 = vst [vmem:[%s227 + $0x10] sm:$0xff] %v2002
      %2011 = vst [vmem:[%s227 + $0x18] sm:$0xff] %v2003
      %s2012 = smul.u32 8, %s22
      %p2013 = scmp.lt.s32.totalorder %s21, 1
      %s2014 = scalar_select %p2013, %s21, 1
      %p2015 = scmp.lt.s32.totalorder %s2012, 15
      %s2016 = scalar_select %p2015, %s2012, 15
      %s2017 = smul.addr %s2014, 16
      %s2018 = sadd.s32 %s2016, %s2017
      %s2019 = smul.addr %s2018, 4
      %s2020 = scalar_lea.vmem %s6, %s2019
      // Predicated region
      $region75: #{residual_block.1} parent=39 // pred_check
        %p2021 = pneg %p154
      $region76: #{residual_block.1} parent=39 // pred_check_branch
        %2023 = sbr.rel (%p2021) target = $region78
      $region77: #{residual_block.1} parent=39 // pred_region
        %s2024 = smul.u32 8, %s22
      $region78: #{residual_block.1} parent=39 // pred_fallthru
        _
    $region40: #{residual_block.1} parent=5 // pred_fallthru
      _
    %p2025 = scmp.le.s32.totalorder 2, %s12
    // Predicated region
    $region79: #{residual_block.1} parent=5 // pred_check
      %p2026 = pneg %p2025
    $region80: #{residual_block.1} parent=5 // pred_check_branch
      %2028 = sbr.rel (%p2026) target = $region82
    $region81: #{residual_block.1} parent=5 // pred_region
      %s2029 = ssub.s32 %s12, 2
      // Predicated region
      $region83: #{residual_block.1} parent=81 // pred_check
        %p2030 = pneg %p160
      $region84: #{residual_block.1} parent=81 // pred_check_branch
        %2032 = sbr.rel (%p2030) target = $region86
      $region85: #{residual_block.1} parent=81 // pred_region
        %s2033 = smul.u32 8, %s24
        %p2034 = scmp.lt.s32.totalorder %s23, 1
        %s2035 = scalar_select %p2034, %s23, 1
        %p2036 = scmp.lt.s32.totalorder %s2033, 15
        %s2037 = scalar_select %p2036, %s2033, 15
        %s2038 = smul.addr %s2035, 16
        %s2039 = sadd.s32 %s2037, %s2038
        %s2040 = smul.addr %s2039, 4
        %s2041 = scalar_lea.vmem %s6, %s2040
      $region86: #{residual_block.1} parent=81 // pred_fallthru
        _
    $region82: #{residual_block.1} parent=5 // pred_fallthru
      _
  $region6: #{residual_block.1} parent=0 // loop_footer
    %s16 = sadd.s32 1, %s12
  $region7: #{residual_block.1} parent=0 // loop_footer_branch
    %11 = sbr.rel target = $region3
  $region8: #{residual_block.1} parent=0 // loop_exit
    _
  %2042 = vsyncmov [#allocation4]
  %s2043 = vpop.sfrf %2042
  %p2044 = scmp.eq.s32.totalorder %s2043, 0
  %p2045 = pneg %p2044
  %2047 = shalt.err (%p2045)

</llo_original>
